<compile_context>
chip_gen: v5e
topology: v5e:2x2
jax: 0.10.0
libtpu: 0.0.40
codegen_flags: <defaults>
</compile_context>

<pallas_src>
import jax
import jax.numpy as jnp
from jax.experimental import pallas as pl
from jax.experimental.pallas import tpu as pltpu


def _pick_row_tile(S):
    # Largest multiple-of-128 row tile that divides S; otherwise keep the whole
    # sequence in one tile (R = 1) instead of dropping to tiny, MXU-underfilling
    # tiles.  128-multiples also keep the int8 attn block legal when TM != S.
    for tm in (512, 256, 128):
        if S % tm == 0:
            return tm
    return S


def _vmem_bytes_estimate(S, D, TM):
    # Double-buffered pipeline blocks + bf16 scratch + rough in-body intermediates.
    est = 0
    est += 2 * S * D * 4                 # emb f32 input block (resident, 2 buffers)
    est += S * D * 2                     # bf16 emb scratch
    est += 2 * TM * S * 1                # attn int8 tile
    est += 2 * TM * D * 4                # out f32 tile
    est += 2 * (TM * 4 + 8 * S * 4)      # pos col / row blocks (sublane-padded)
    est += TM * S * (2 + 1) + TM * D * 8  # ntm/bool masks + avg/where temporaries
    return est


def _node_feat_kernel(pos_col_ref, pos_row_ref, attn_ref, emb_ref, out_ref, emb_bf_ref):
    # Shapes seen by the kernel (batch dim squeezed by BlockSpec):
    #   pos_col : (TM, 1) int32   position_idx slice for this row tile
    #   pos_row : (1,  S) int32   full position_idx row (token mask over columns)
    #   attn    : (TM, S) int8    attention mask tile (raw 1-byte stream)
    #   emb     : (S,  D) f32     word embeddings, VMEM-resident across row tiles
    #   out     : (TM, D) f32
    #   emb_bf  : (S,  D) bf16    scratch: bf16 copy of emb, refreshed at r == 0
    r = pl.program_id(1)
    tm = out_ref.shape[0]

    # Cast the resident emb block to bf16 once per batch element; every row tile of
    # this batch reuses it as the MXU RHS.
    @pl.when(r == 0)
    def _():
        emb_bf_ref[...] = emb_ref[...].astype(jnp.bfloat16)

    nodes_b = pos_col_ref[...] == 0                                   # (TM, 1) bool

    # f32 rows of emb for this tile: exact passthrough for non-node rows.
    row_start = pl.multiple_of(r * tm, tm)
    emb_rows = emb_ref[pl.ds(row_start, tm), :]                       # (TM, D) f32

    node_count = jnp.sum(nodes_b.astype(jnp.int32))

    @pl.when(node_count > 0)
    def _():
        token_b = pos_row_ref[...] >= 2                               # (1,  S) bool
        # NOTE: assumes a 0/1 (bool-like) attention mask, as the module's `&` implies.
        attn_b = attn_ref[...] != 0                                   # (TM, S) bool
        ntm_b = nodes_b & token_b & attn_b                            # (TM, S) bool
        ntm = ntm_b.astype(jnp.bfloat16)                              # exact 0/1 in bf16
        denom = jnp.sum(ntm_b.astype(jnp.int32), axis=-1, keepdims=True)  # (TM, 1)
        inv = 1.0 / (denom.astype(jnp.float32) + 1e-10)               # exact f32 recip
        avg = jnp.dot(ntm, emb_bf_ref[...],
                      preferred_element_type=jnp.float32)             # (TM, D) on MXU
        out_ref[...] = jnp.where(nodes_b, avg * inv, emb_rows)

    @pl.when(node_count == 0)
    def _():
        # No node rows in this tile: skip the matmul, pure f32 passthrough.
        out_ref[...] = emb_rows


def init_node_features(code_inputs, attn_mask, position_idx, emb_table):
    """JAX/Pallas equivalent of the code_inputs branch (up to the encoder call)."""
    B, S = code_inputs.shape
    D = emb_table.shape[1]

    # Glue: embedding lookup (arbitrary-vocab gather stays in XLA).
    inputs_embeddings = emb_table[code_inputs].astype(jnp.float32)    # (B, S, D)

    # Feed masks in their narrow native dtypes; all casts happen inside the kernel.
    attn_i8 = attn_mask.astype(jnp.int8)                              # (B, S, S)
    pos_i32 = position_idx.astype(jnp.int32)
    pos_col = pos_i32[:, :, None]                                     # (B, S, 1)
    pos_row = pos_i32[:, None, :]                                     # (B, 1, S)

    TM = _pick_row_tile(S)
    R = S // TM

    vmem_limit = int(min(max(_vmem_bytes_estimate(S, D, TM) * 3 // 2, 32 * 2**20),
                         64 * 2**20))

    cost = pl.CostEstimate(
        flops=2 * B * S * S * D,
        transcendentals=0,
        bytes_accessed=B * (S * S * 1        # attn int8
                            + 2 * S * D * 4  # emb in + out (f32)
                            + 2 * S * 4),    # position_idx col/row
    )

    return pl.pallas_call(
        _node_feat_kernel,
        out_shape=jax.ShapeDtypeStruct((B, S, D), jnp.float32),
        grid=(B, R),                                   # row axis innermost
        in_specs=[
            pl.BlockSpec((None, TM, 1), lambda b, r: (b, r, 0)),   # pos_col tile
            pl.BlockSpec((None, 1, S), lambda b, r: (b, 0, 0)),    # pos_row (full)
            pl.BlockSpec((None, TM, S), lambda b, r: (b, r, 0)),   # attn tile (int8)
            pl.BlockSpec((None, S, D), lambda b, r: (b, 0, 0)),    # emb resident over r
            # NOTE: for very long sequences the resident emb block dominates VMEM;
            # pipeline_mode=pl.Buffered(1) on this spec (it is revisited across r)
            # halves that allocation at the cost of an exposed DMA per batch.
        ],
        out_specs=pl.BlockSpec((None, TM, D), lambda b, r: (b, r, 0)),
        scratch_shapes=[pltpu.VMEM((S, D), jnp.bfloat16)],
        compiler_params=pltpu.CompilerParams(
            # batch axis parallel (megacore split on B), row axis sequential per core
            dimension_semantics=("parallel", "arbitrary"),
            vmem_limit_bytes=vmem_limit,
        ),
        cost_estimate=cost,
    )(pos_col, pos_row, attn_i8, inputs_embeddings)


def _reference(code_inputs, attn_mask, position_idx, emb_table):
    """Pure-JAX reference mirroring the PyTorch math (all-f32)."""
    nodes_mask = (position_idx == 0)
    token_mask = (position_idx >= 2)
    emb = emb_table[code_inputs].astype(jnp.float32)
    ntm = (nodes_mask[:, :, None] & token_mask[:, None, :] & attn_mask).astype(jnp.float32)
    ntm = ntm / (ntm.sum(-1) + 1e-10)[:, :, None]
    avg = jnp.einsum("abc,acd->abd", ntm, emb)
    return emb * (~nodes_mask)[:, :, None] + avg * nodes_mask[:, :, None]


if __name__ == "__main__":
    # S = 384 -> TM = 128, R = 3: exercises the multi-row-tile path, the resident emb
    # block across row tiles, AND the node-free-tile skip branch.
    B, S, D, V = 2, 384, 128, 97

    key = jax.random.PRNGKey(0)
    k_tok, k_attn, k_emb = jax.random.split(key, 3)

    code_inputs = jax.random.randint(k_tok, (B, S), 0, V, dtype=jnp.int32)

    # GraphCodeBERT-style layout: code tokens (>=2) first, graph nodes (==0) in a
    # trailing block, padding (==1) at the end.  Tiles 0/1 have no nodes for batch 0
    # (skip path); batch 1 additionally has a node row in tile 0 (matmul path).
    n_tok, n_node = 280, 60
    pos = jnp.concatenate([
        jnp.arange(2, 2 + n_tok, dtype=jnp.int32),
        jnp.zeros((n_node,), jnp.int32),
        jnp.ones((S - n_tok - n_node,), jnp.int32),
    ])
    position_idx = jnp.stack([pos, pos.at[0].set(0)])

    attn_mask = jax.random.bernoulli(k_attn, 0.6, (B, S, S))
    # Deterministic synthetic word-embedding table (encoder.embeddings.word_embeddings).
    emb_table = jax.random.normal(k_emb, (V, D), dtype=jnp.float32) * 0.02

    out = init_node_features(code_inputs, attn_mask, position_idx, emb_table)
    out = jax.block_until_ready(out)

    ref = _reference(code_inputs, attn_mask, position_idx, emb_table)
    assert out.shape == (B, S, D)
    # Non-node rows are bit-exact f32; node rows carry only bf16-RHS rounding in the
    # MXU dot (f32 accumulate), well inside these tolerances.
    assert jnp.allclose(out, ref, atol=5e-4, rtol=5e-3), "mismatch vs reference"

    print("KERNEL_OK")
</pallas_src>

<mosaic_0001>
module attributes {stable_mosaic.version = 11 : i64} {
  func.func @_node_feat_kernel(%arg0: i32, %arg1: i32, %arg2: memref<1x128x1xi32, #tpu.memory_space<vmem>>, %arg3: memref<1x1x384xi32, #tpu.memory_space<vmem>>, %arg4: memref<1x128x384xi8, #tpu.memory_space<vmem>>, %arg5: memref<1x384x128xf32, #tpu.memory_space<vmem>>, %arg6: memref<1x128x128xf32, #tpu.memory_space<vmem>>, %arg7: memref<384x128xbf16, #tpu.memory_space<vmem>>) attributes {dimension_semantics = [#tpu.dimension_semantics<parallel>, #tpu.dimension_semantics<arbitrary>], iteration_bounds = array<i64: 2, 3>, scalar_prefetch = 0 : i64, scratch_operands = 1 : i64, tpu.core_type = #tpu.core_type<tc>, window_params = [{transform_indices = @transform_0, window_bounds = array<i64: 1, 128, 1>}, {transform_indices = @transform_1, window_bounds = array<i64: 1, 1, 384>}, {transform_indices = @transform_2, window_bounds = array<i64: 1, 128, 384>}, {transform_indices = @transform_3, window_bounds = array<i64: 1, 384, 128>}, {transform_indices = @transform_4, window_bounds = array<i64: 1, 128, 128>}]} {
    %c0_i32 = arith.constant 0 : i32
    %0 = arith.cmpi eq, %arg1, %c0_i32 : i32
    %1 = arith.extui %0 : i1 to i32
    %c0_i32_0 = arith.constant 0 : i32
    %2 = arith.cmpi ne, %1, %c0_i32_0 : i32
    scf.if %2 {
      %c0_10 = arith.constant 0 : index
      %c0_11 = arith.constant 0 : index
      %c0_12 = arith.constant 0 : index
      %23 = vector.load %arg5[%c0_10, %c0_11, %c0_12] : memref<1x384x128xf32, #tpu.memory_space<vmem>>, vector<1x384x128xf32>
      %24 = vector.shape_cast %23 : vector<1x384x128xf32> to vector<384x128xf32>
      %25 = arith.truncf %24 : vector<384x128xf32> to vector<384x128xbf16>
      %c0_13 = arith.constant 0 : index
      %c0_14 = arith.constant 0 : index
      %26 = vector.load %arg7[%c0_13, %c0_14] : memref<384x128xbf16, #tpu.memory_space<vmem>>, vector<384x128xbf16>
      tpu.vector_store %arg7[%c0_13, %c0_14], %25 {strides = array<i32>} : memref<384x128xbf16, #tpu.memory_space<vmem>>, vector<384x128xbf16>,
    } else {
    }
    %c0 = arith.constant 0 : index
    %c0_1 = arith.constant 0 : index
    %c0_2 = arith.constant 0 : index
    %3 = vector.load %arg2[%c0, %c0_1, %c0_2] : memref<1x128x1xi32, #tpu.memory_space<vmem>>, vector<1x128x1xi32>
    %4 = vector.shape_cast %3 : vector<1x128x1xi32> to vector<128x1xi32>
    %c0_i32_3 = arith.constant 0 : i32
    %5 = vector.broadcast %c0_i32_3 : i32 to vector<128x1xi32>
    %6 = arith.cmpi eq, %4, %5 : vector<128x1xi32>
    %c128_i32 = arith.constant 128 : i32
    %7 = arith.muli %arg1, %c128_i32 : i32
    %8 = tpu.assume_multiple %7, 128 : i32
    %c0_4 = arith.constant 0 : index
    %9 = arith.index_cast %8 : i32 to index
    %c0_5 = arith.constant 0 : index
    %10 = vector.load %arg5[%c0_4, %9, %c0_5] : memref<1x384x128xf32, #tpu.memory_space<vmem>>, vector<1x128x128xf32>
    %11 = vector.shape_cast %10 : vector<1x128x128xf32> to vector<128x128xf32>
    %12 = arith.extui %6 : vector<128x1xi1> to vector<128x1xi32>
    %13 = vector.shape_cast %12 : vector<128x1xi32> to vector<1x128x1xi32>
    %cst = arith.constant dense<0> : vector<1xi32>
    %14 = vector.multi_reduction <add>, %13, %cst [1, 2] : vector<1x128x1xi32> to vector<1xi32>
    %15 = vector.shape_cast %14 : vector<1xi32> to vector<1x1x1xi32>
    %16 = vector.extract %15[0, 0, 0] : i32 from vector<1x1x1xi32>
    %c0_i32_6 = arith.constant 0 : i32
    %17 = arith.cmpi sgt, %16, %c0_i32_6 : i32
    %18 = arith.extui %17 : i1 to i32
    %c0_i32_7 = arith.constant 0 : i32
    %19 = arith.cmpi ne, %18, %c0_i32_7 : i32
    scf.if %19 {
      %c0_10 = arith.constant 0 : index
      %c0_11 = arith.constant 0 : index
      %c0_12 = arith.constant 0 : index
      %23 = vector.load %arg3[%c0_10, %c0_11, %c0_12] : memref<1x1x384xi32, #tpu.memory_space<vmem>>, vector<1x1x384xi32>
      %24 = vector.shape_cast %23 : vector<1x1x384xi32> to vector<1x384xi32>
      %c2_i32 = arith.constant 2 : i32
      %25 = vector.broadcast %c2_i32 : i32 to vector<1x384xi32>
      %26 = arith.cmpi sge, %24, %25 : vector<1x384xi32>
      %c0_13 = arith.constant 0 : index
      %c0_14 = arith.constant 0 : index
      %c0_15 = arith.constant 0 : index
      %27 = vector.load %arg4[%c0_13, %c0_14, %c0_15] : memref<1x128x384xi8, #tpu.memory_space<vmem>>, vector<1x128x384xi8>
      %28 = vector.shape_cast %27 : vector<1x128x384xi8> to vector<128x384xi8>
      %c0_i8 = arith.constant 0 : i8
      %29 = vector.broadcast %c0_i8 : i8 to vector<128x384xi8>
      %30 = arith.cmpi ne, %28, %29 : vector<128x384xi8>
      %31 = vector.broadcast %6 : vector<128x1xi1> to vector<128x384xi1>
      %32 = vector.broadcast %26 : vector<1x384xi1> to vector<128x384xi1>
      %33 = arith.andi %31, %32 : vector<128x384xi1>
      %34 = arith.andi %33, %30 : vector<128x384xi1>
      %35 = arith.extui %34 : vector<128x384xi1> to vector<128x384xi32>
      %36 = arith.sitofp %35 : vector<128x384xi32> to vector<128x384xf32>
      %37 = arith.truncf %36 : vector<128x384xf32> to vector<128x384xbf16>
      %38 = arith.extui %34 : vector<128x384xi1> to vector<128x384xi32>
      %cst_16 = arith.constant dense<0> : vector<128xi32>
      %39 = vector.multi_reduction <add>, %38, %cst_16 [1] : vector<128x384xi32> to vector<128xi32>
      %40 = vector.shape_cast %39 : vector<128xi32> to vector<128x1xi32>
      %41 = arith.sitofp %40 : vector<128x1xi32> to vector<128x1xf32>
      %cst_17 = arith.constant 1.000000e-10 : f32
      %42 = vector.broadcast %cst_17 : f32 to vector<128x1xf32>
      %43 = arith.addf %41, %42 : vector<128x1xf32>
      %cst_18 = arith.constant 1.000000e+00 : f32
      %44 = vector.broadcast %cst_18 : f32 to vector<128x1xf32>
      %45 = arith.divf %44, %43 : vector<128x1xf32>
      %c0_19 = arith.constant 0 : index
      %c0_20 = arith.constant 0 : index
      %46 = vector.load %arg7[%c0_19, %c0_20] : memref<384x128xbf16, #tpu.memory_space<vmem>>, vector<384x128xbf16>
      %cst_21 = arith.constant dense<0.000000e+00> : vector<128x128xf32>
      %47 = tpu.matmul %37, %46, %cst_21 {dimension_numbers = #tpu.dot_dimension_numbers<[1], [0], [0], [1], [0, 0, 1, 1], [], []>} : vector<128x384xbf16>, vector<384x128xbf16>, vector<128x128xf32> -> vector<128x128xf32>
      %48 = vector.broadcast %45 : vector<128x1xf32> to vector<128x128xf32>
      %49 = arith.mulf %47, %48 : vector<128x128xf32>
      %50 = vector.shape_cast %6 : vector<128x1xi1> to vector<128x1xi1>
      %51 = vector.broadcast %50 : vector<128x1xi1> to vector<128x128xi1>
      %52 = arith.select %51, %49, %11 : vector<128x128xi1>, vector<128x128xf32>
      %c0_22 = arith.constant 0 : index
      %c0_23 = arith.constant 0 : index
      %c0_24 = arith.constant 0 : index
      %53 = vector.load %arg6[%c0_22, %c0_23, %c0_24] : memref<1x128x128xf32, #tpu.memory_space<vmem>>, vector<1x128x128xf32>
      %54 = vector.shape_cast %53 : vector<1x128x128xf32> to vector<128x128xf32>
      %55 = vector.shape_cast %52 : vector<128x128xf32> to vector<1x128x128xf32>
      tpu.vector_store %arg6[%c0_22, %c0_23, %c0_24], %55 {strides = array<i32>} : memref<1x128x128xf32, #tpu.memory_space<vmem>>, vector<1x128x128xf32>,
    } else {
    }
    %c0_i32_8 = arith.constant 0 : i32
    %20 = arith.cmpi eq, %16, %c0_i32_8 : i32
    %21 = arith.extui %20 : i1 to i32
    %c0_i32_9 = arith.constant 0 : i32
    %22 = arith.cmpi ne, %21, %c0_i32_9 : i32
    scf.if %22 {
      %c0_10 = arith.constant 0 : index
      %c0_11 = arith.constant 0 : index
      %c0_12 = arith.constant 0 : index
      %23 = vector.load %arg6[%c0_10, %c0_11, %c0_12] : memref<1x128x128xf32, #tpu.memory_space<vmem>>, vector<1x128x128xf32>
      %24 = vector.shape_cast %23 : vector<1x128x128xf32> to vector<128x128xf32>
      %25 = vector.shape_cast %11 : vector<128x128xf32> to vector<1x128x128xf32>
      tpu.vector_store %arg6[%c0_10, %c0_11, %c0_12], %25 {strides = array<i32>} : memref<1x128x128xf32, #tpu.memory_space<vmem>>, vector<1x128x128xf32>,
    } else {
    }
    return
  }
  func.func @transform_0(%arg0: i32, %arg1: i32) -> (i32, i32, i32) {
    %c0_i32 = arith.constant 0 : i32
    %c0_i32_0 = arith.constant 0 : i32
    return %arg0, %arg1, %c0_i32 : i32, i32, i32
  }
  func.func @transform_1(%arg0: i32, %arg1: i32) -> (i32, i32, i32) {
    %c0_i32 = arith.constant 0 : i32
    %c0_i32_0 = arith.constant 0 : i32
    %c0_i32_1 = arith.constant 0 : i32
    return %arg0, %c0_i32, %c0_i32_0 : i32, i32, i32
  }
  func.func @transform_2(%arg0: i32, %arg1: i32) -> (i32, i32, i32) {
    %c0_i32 = arith.constant 0 : i32
    %c0_i32_0 = arith.constant 0 : i32
    return %arg0, %arg1, %c0_i32 : i32, i32, i32
  }
  func.func @transform_3(%arg0: i32, %arg1: i32) -> (i32, i32, i32) {
    %c0_i32 = arith.constant 0 : i32
    %c0_i32_0 = arith.constant 0 : i32
    %c0_i32_1 = arith.constant 0 : i32
    return %arg0, %c0_i32, %c0_i32_0 : i32, i32, i32
  }
  func.func @transform_4(%arg0: i32, %arg1: i32) -> (i32, i32, i32) {
    %c0_i32 = arith.constant 0 : i32
    %c0_i32_0 = arith.constant 0 : i32
    return %arg0, %arg1, %c0_i32 : i32, i32, i32
  }
}

</mosaic_0001>

<llo_original>
// kernel: tpu_custom_call.1
$region0: #{tpu_custom_call.1}
  #allocation0 [shape = 'u32[]', space=smem, size = 0x4, offset = 0x4, fixed_abs, tag = 'smem constant byte address 0x4 - core index']
  #allocation1 [shape = 'u32[72,128]{1,0:T(1,128)}', space=vmem, size = 0x9000, scoped, tag = 'internal scratch']
  #allocation2 [shape = 'bf16[384,128]{1,0:T(8,128)(2,1)}', space=vmem, size = 0x18000, scoped, tag = 'scratch operand']
  %s0 = inlined_call_operand.vmem [shape: s32[2,384,1], index: 0, kind: input, shape index: {}]
  %s1 = inlined_call_operand.vmem [shape: s32[2,1,384], index: 1, kind: input, shape index: {}]
  %s2 = inlined_call_operand.hbm [shape: s8[2,384,384], index: 2, kind: input, shape index: {}]
  %s3 = inlined_call_operand.vmem [shape: f32[2,384,128], index: 3, kind: input, shape index: {}]
  %s4 = inlined_call_operand.hbm [shape: f32[2,384,128], index: 4, kind: output, shape index: {}]
  %s5 = sld [smem:[#allocation0]]
  $region65: #{tpu_custom_call.1} parent=0
    _
  %s7 = ssub.s32 1, %s5
  %s8 = scalar_select 0, %s7, %s5
  $region1: #{tpu_custom_call.1} parent=0
    #allocation3 [shape = 'u8[98304]{0}', space=vmem, size = 0x18000, scoped, tag = 'input window, operand 2']
    #allocation4 [shape = 's32[2]{0}', space=sflag, size = 0x8, scoped, tag = 'scoped memory for tpu_custom_call.1']
    #allocation5 [shape = 's32[2]{0}', space=sflag, size = 0x8, scoped, tag = 'scoped memory for tpu_custom_call.1']
    #allocation6 [shape = 'u8[131072]{0}', space=vmem, size = 0x20000, scoped, tag = 'output window, operand 0']
    %9 = vsyncpa [#allocation4], 0
    %s10 = scalar_lea.sflag [#allocation4], 1
    %11 = vsyncpa %s10, 0
    %12 = vsyncpa [#allocation5], 0
    %s13 = scalar_lea.sflag [#allocation5], 1
    %14 = vsyncpa %s13, 0
    loop: start=0, step=1, limit=8
    $region2: #{tpu_custom_call.1} parent=1 // loop_pre_header
      _
    $region3: #{tpu_custom_call.1} parent=1 // loop_header
      %s16 = sphi 0, %s20
      %p17 = scmp.ge.s32.totalorder %s16, 8
      %s23 = sphi 0, %s35
      %s24 = sphi 0, %s31
      %s25 = sphi 0, %s23
      %s26 = sphi 0, %s24
      %s27 = sphi 0, %s25
      %s28 = sphi 0, %s26
      %s40 = sphi 0, %s42
      %s43 = sphi 0, %s40
      %s44 = sphi 0, %s43
      %s60 = sphi 0, %s44
      %s66 = sphi 0, %s68
      %s69 = sphi 0, %s66
      %s70 = sphi 0, %s69
      %s86 = sphi 0, %s70
      %s94 = sphi 0, %s96
      %s97 = sphi 0, %s94
      %s98 = sphi 0, %s97
      %s114 = sphi 0, %s98
      %s120 = sphi 0, %s122
      %s123 = sphi 0, %s120
      %s124 = sphi 0, %s123
      %s140 = sphi 0, %s124
      %s148 = sphi 0, %s150
      %s151 = sphi 0, %s148
      %s152 = sphi 0, %s151
      %s168 = sphi 0, %s152
    $region4: #{tpu_custom_call.1} parent=1 // loop_header_branch
      %19 = sbr.rel (%p17) target = $region8
    $region5: #{tpu_custom_call.1} parent=1 // loop_body
      %s21 = ssub.s32 %s16, 1
      %s22 = ssub.s32 %s16, 2
      %s29 = sadd.s32 1, %s24
      %p30 = scmp.ge.s32.totalorder %s29, 3
      %s31 = scalar_select %p30, 0, %s29
      %s32 = sadd.s32 1, %s23
      %s33 = scalar_select %p30, %s32, %s23
      %p34 = scmp.ge.s32.totalorder %s33, 2
      %s35 = scalar_select %p34, 0, %s33
      %s36 = ssub.s32 %s23, %s35
      %s37 = ssub.s32 %s24, %s31
      %s38 = sor.u32 %s36, %s37
      %p39 = scmp.eq.s32.totalorder %s38, 0
      %s41 = sadd.s32 %s40, 1
      %s42 = scalar_select %p39, %s40, %s41
      %p45 = pneg %p39
      %p46 = scmp.eq.s32.totalorder %s16, 5
      %p47 = por %p45, %p46
      %p48 = scmp.ne.s32.totalorder %s40, %s43
      %p49 = scmp.eq.s32.totalorder %s16, 0
      %p50 = por %p48, %p49
      %p51 = scmp.ne.s32.totalorder %s40, %s43
      %p52 = scmp.eq.s32.totalorder %s21, 5
      %p53 = por %p51, %p52
      %p54 = scmp.ne.s32.totalorder %s43, %s44
      %p55 = scmp.eq.s32.totalorder %s21, 0
      %p56 = por %p54, %p55
      %p57 = scmp.ne.s32.totalorder %s43, %s44
      %p58 = scmp.eq.s32.totalorder %s22, 5
      %p59 = por %p57, %p58
      %p61 = scmp.ne.s32.totalorder %s44, %s60
      %p62 = scmp.eq.s32.totalorder %s22, 0
      %p63 = por %p61, %p62
      %s64 = ssub.s32 %s23, %s35
      %p65 = scmp.eq.s32.totalorder %s64, 0
      %s67 = sadd.s32 %s66, 1
      %s68 = scalar_select %p65, %s66, %s67
      %p71 = pneg %p65
      %p72 = scmp.eq.s32.totalorder %s16, 5
      %p73 = por %p71, %p72
      %p74 = scmp.ne.s32.totalorder %s66, %s69
      %p75 = scmp.eq.s32.totalorder %s16, 0
      %p76 = por %p74, %p75
      %p77 = scmp.ne.s32.totalorder %s66, %s69
      %p78 = scmp.eq.s32.totalorder %s21, 5
      %p79 = por %p77, %p78
      %p80 = scmp.ne.s32.totalorder %s69, %s70
      %p81 = scmp.eq.s32.totalorder %s21, 0
      %p82 = por %p80, %p81
      %p83 = scmp.ne.s32.totalorder %s69, %s70
      %p84 = scmp.eq.s32.totalorder %s22, 5
      %p85 = por %p83, %p84
      %p87 = scmp.ne.s32.totalorder %s70, %s86
      %p88 = scmp.eq.s32.totalorder %s22, 0
      %p89 = por %p87, %p88
      %s90 = ssub.s32 %s23, %s35
      %s91 = ssub.s32 %s24, %s31
      %s92 = sor.u32 %s90, %s91
      %p93 = scmp.eq.s32.totalorder %s92, 0
      %s95 = sadd.s32 %s94, 1
      %s96 = scalar_select %p93, %s94, %s95
      %p99 = pneg %p93
      %p100 = scmp.eq.s32.totalorder %s16, 5
      %p101 = por %p99, %p100
      %p102 = scmp.ne.s32.totalorder %s94, %s97
      %p103 = scmp.eq.s32.totalorder %s16, 0
      %p104 = por %p102, %p103
      %p105 = scmp.ne.s32.totalorder %s94, %s97
      %p106 = scmp.eq.s32.totalorder %s21, 5
      %p107 = por %p105, %p106
      %p108 = scmp.ne.s32.totalorder %s97, %s98
      %p109 = scmp.eq.s32.totalorder %s21, 0
      %p110 = por %p108, %p109
      %p111 = scmp.ne.s32.totalorder %s97, %s98
      %p112 = scmp.eq.s32.totalorder %s22, 5
      %p113 = por %p111, %p112
      %p115 = scmp.ne.s32.totalorder %s98, %s114
      %p116 = scmp.eq.s32.totalorder %s22, 0
      %p117 = por %p115, %p116
      %s118 = ssub.s32 %s23, %s35
      %p119 = scmp.eq.s32.totalorder %s118, 0
      %s121 = sadd.s32 %s120, 1
      %s122 = scalar_select %p119, %s120, %s121
      %p125 = pneg %p119
      %p126 = scmp.eq.s32.totalorder %s16, 5
      %p127 = por %p125, %p126
      %p128 = scmp.ne.s32.totalorder %s120, %s123
      %p129 = scmp.eq.s32.totalorder %s16, 0
      %p130 = por %p128, %p129
      %p131 = scmp.ne.s32.totalorder %s120, %s123
      %p132 = scmp.eq.s32.totalorder %s21, 5
      %p133 = por %p131, %p132
      %p134 = scmp.ne.s32.totalorder %s123, %s124
      %p135 = scmp.eq.s32.totalorder %s21, 0
      %p136 = por %p134, %p135
      %p137 = scmp.ne.s32.totalorder %s123, %s124
      %p138 = scmp.eq.s32.totalorder %s22, 5
      %p139 = por %p137, %p138
      %p141 = scmp.ne.s32.totalorder %s124, %s140
      %p142 = scmp.eq.s32.totalorder %s22, 0
      %p143 = por %p141, %p142
      %s144 = ssub.s32 %s23, %s35
      %s145 = ssub.s32 %s24, %s31
      %s146 = sor.u32 %s144, %s145
      %p147 = scmp.eq.s32.totalorder %s146, 0
      %s149 = sadd.s32 %s148, 1
      %s150 = scalar_select %p147, %s148, %s149
      %p153 = pneg %p147
      %p154 = scmp.eq.s32.totalorder %s16, 5
      %p155 = por %p153, %p154
      %p156 = scmp.ne.s32.totalorder %s148, %s151
      %p157 = scmp.eq.s32.totalorder %s16, 0
      %p158 = por %p156, %p157
      %p159 = scmp.ne.s32.totalorder %s148, %s151
      %p160 = scmp.eq.s32.totalorder %s21, 5
      %p161 = por %p159, %p160
      %p162 = scmp.ne.s32.totalorder %s151, %s152
      %p163 = scmp.eq.s32.totalorder %s21, 0
      %p164 = por %p162, %p163
      %p165 = scmp.ne.s32.totalorder %s151, %s152
      %p166 = scmp.eq.s32.totalorder %s22, 5
      %p167 = por %p165, %p166
      %p169 = scmp.ne.s32.totalorder %s152, %s168
      %p170 = scmp.eq.s32.totalorder %s22, 0
      %p171 = por %p169, %p170
      %p172 = scmp.le.s32.totalorder 1, %s16
      %p173 = scmp.lt.s32.totalorder %s16, 7
      %p174 = pnand %p172, %p173
      %p175 = pneg %p174
      // Predicated region
      $region9: #{tpu_custom_call.1} parent=5 // pred_check
        _
      $region10: #{tpu_custom_call.1} parent=5 // pred_check_branch
        %177 = sbr.rel (%p174) target = $region12
      $region11: #{tpu_custom_call.1} parent=5 // pred_region
        %s178 = ssub.s32 %s16, 1
      $region12: #{tpu_custom_call.1} parent=5 // pred_fallthru
        _
      %p179 = scmp.lt.s32.totalorder %s16, 6
      // Predicated region
      $region13: #{tpu_custom_call.1} parent=5 // pred_check
        %p180 = pneg %p179
      $region14: #{tpu_custom_call.1} parent=5 // pred_check_branch
        %182 = sbr.rel (%p180) target = $region16
      $region15: #{tpu_custom_call.1} parent=5 // pred_region
        // Predicated region
        $region17: #{tpu_custom_call.1} parent=15 // pred_check
          %p183 = pneg %p50
        $region18: #{tpu_custom_call.1} parent=15 // pred_check_branch
          %185 = sbr.rel (%p183) target = $region20
        $region19: #{tpu_custom_call.1} parent=15 // pred_region
          %s186 = smul.u32 16, %s24
          %p187 = scmp.lt.s32.totalorder %s23, 1
          %s188 = scalar_select %p187, %s23, 1
          %p189 = scmp.lt.s32.totalorder %s186, 47
          %s190 = scalar_select %p189, %s186, 47
          %s191 = smul.addr %s188, 48
          %s192 = sadd.s32 %s190, %s191
          %s193 = smul.addr %s192, 8
          %s194 = scalar_lea.vmem %s0, %s193
          %s195 = smul.u32 16, %s24
        $region20: #{tpu_custom_call.1} parent=15 // pred_fallthru
          _
        // Predicated region
        $region21: #{tpu_custom_call.1} parent=15 // pred_check
          %p196 = pneg %p76
        $region22: #{tpu_custom_call.1} parent=15 // pred_check_branch
          %198 = sbr.rel (%p196) target = $region24
        $region23: #{tpu_custom_call.1} parent=15 // pred_region
          %p199 = scmp.lt.s32.totalorder %s23, 1
          %s200 = scalar_select %p199, %s23, 1
          %s201 = smul.addr %s200, 3
          %s202 = scalar_lea.vmem %s1, %s201
        $region24: #{tpu_custom_call.1} parent=15 // pred_fallthru
          _
        // Predicated region
        $region25: #{tpu_custom_call.1} parent=15 // pred_check
          %p203 = pneg %p104
        $region26: #{tpu_custom_call.1} parent=15 // pred_check_branch
          %205 = sbr.rel (%p203) target = $region28
        $region27: #{tpu_custom_call.1} parent=15 // pred_region
          %s206 = sand.u32 %s94, 1
          %s207 = scalar_lea.sflag [#allocation4], %s206
          %s208 = sand.u32 %s94, 1
          %s209 = smul.addr %s208, 96
          %s210 = scalar_lea.vmem [#allocation3], %s209
          %s211 = smul.u32 4, %s24
          %213 = vsyncadd %s207, 0
          %s214 = smul.addr %s211, 3
          %s215 = smul.addr %s23, 36
          %s216 = sadd.s32 %s214, %s215
          %s217 = smul.addr %s216, 8
          %s218 = scalar_lea.hbm %s2, %s217
          %s219 = sshll.u32 %s218, 4
          %s220 = int_to_ptr.hbm [resolvable:$true] %s219
          %s221 = sshll.u32 %s210, 4
          %s222 = int_to_ptr.vmem [resolvable:$true] %s221
          %227 = dma.hbm_to_vmem [thread:$0]  %s220, 1536, %s222, %s207, 384, 384, 24
        $region28: #{tpu_custom_call.1} parent=15 // pred_fallthru
          _
        // Predicated region
        $region29: #{tpu_custom_call.1} parent=15 // pred_check
          %p228 = pneg %p130
        $region30: #{tpu_custom_call.1} parent=15 // pred_check_branch
          %230 = sbr.rel (%p228) target = $region32
        $region31: #{tpu_custom_call.1} parent=15 // pred_region
          %p231 = scmp.lt.s32.totalorder %s23, 1
          %s232 = scalar_select %p231, %s23, 1
          %s233 = smul.addr %s232, 48
          %s234 = smul.addr %s233, 8
          %s235 = scalar_lea.vmem %s3, %s234
        $region32: #{tpu_custom_call.1} parent=15 // pred_fallthru
          _
      $region16: #{tpu_custom_call.1} parent=5 // pred_fallthru
        _
      %p236 = scmp.le.s32.totalorder 1, %s16
      %p237 = scmp.lt.s32.totalorder %s16, 7
      %p238 = pnand %p236, %p237
      %p239 = pneg %p238
      // Predicated region
      $region33: #{tpu_custom_call.1} parent=5 // pred_check
        _
      $region34: #{tpu_custom_call.1} parent=5 // pred_check_branch
        %241 = sbr.rel (%p238) target = $region36
      $region35: #{tpu_custom_call.1} parent=5 // pred_region
        %s242 = ssub.s32 %s16, 1
        %s243 = sand.u32 %s97, 1
        %s244 = scalar_lea.sflag [#allocation4], %s243
        %s245 = sand.u32 %s97, 1
        %s246 = smul.addr %s245, 96
        %s247 = scalar_lea.vmem [#allocation3], %s246
        // Predicated region
        $region37: #{tpu_custom_call.1} parent=35 // pred_check
          %p248 = pneg %p110
        $region38: #{tpu_custom_call.1} parent=35 // pred_check_branch
          %250 = sbr.rel (%p248) target = $region40
        $region39: #{tpu_custom_call.1} parent=35 // pred_region
          %252 = dma.done %s244, 1536
        $region40: #{tpu_custom_call.1} parent=35 // pred_fallthru
          _
        %s253 = smul.u32 16, %s26
        %p254 = scmp.lt.s32.totalorder %s25, 1
        %s255 = scalar_select %p254, %s25, 1
        %p256 = scmp.lt.s32.totalorder %s253, 47
        %s257 = scalar_select %p256, %s253, 47
        %s258 = smul.addr %s255, 48
        %s259 = sadd.s32 %s257, %s258
        %s260 = smul.addr %s259, 8
        %s261 = scalar_lea.vmem %s0, %s260
        %p262 = pneg %p56
        %p263 = pneg %p53
        %p264 = scmp.lt.s32.totalorder %s25, 1
        %s265 = scalar_select %p264, %s25, 1
        %s266 = smul.addr %s265, 3
        %s267 = scalar_lea.vmem %s1, %s266
        %p268 = pneg %p82
        %p269 = pneg %p79
        %s270 = sand.u32 %s97, 1
        %s271 = scalar_lea.sflag [#allocation4], %s270
        %s272 = sand.u32 %s97, 1
        %s273 = smul.addr %s272, 96
        %s274 = scalar_lea.vmem [#allocation3], %s273
        %p275 = pneg %p110
        %p276 = pneg %p107
        %p277 = scmp.lt.s32.totalorder %s25, 1
        %s278 = scalar_select %p277, %s25, 1
        %s279 = smul.addr %s278, 48
        %s280 = smul.addr %s279, 8
        %s281 = scalar_lea.vmem %s3, %s280
        %p282 = pneg %p136
        %p283 = pneg %p133
        %p284 = pneg %p164
        %p285 = pneg %p161
        %s286 = sand.u32 %s151, 1
        %s287 = scalar_lea.sflag [#allocation5], %s286
        %s288 = sand.u32 %s151, 1
        %s289 = smul.addr %s288, 128
        %s290 = scalar_lea.vmem [#allocation6], %s289
        %s291 = smul.u32 16, %s26
        %p292 = scmp.lt.s32.totalorder %s25, 1
        %s293 = scalar_select %p292, %s25, 1
        %p294 = scmp.lt.s32.totalorder %s291, 47
        %s295 = scalar_select %p294, %s291, 47
        %s296 = smul.addr %s293, 48
        %s297 = sadd.s32 %s295, %s296
        %s298 = smul.addr %s297, 8
        %s299 = scalar_lea.vmem %s0, %s298
        %s300 = smul.u32 16, %s26
        %p301 = scmp.lt.s32.totalorder %s25, 1
        %s302 = scalar_select %p301, %s25, 1
        %s303 = smul.addr %s302, 3
        %s304 = scalar_lea.vmem %s1, %s303
        %s305 = smul.u32 4, %s26
        %p306 = scmp.lt.s32.totalorder %s25, 1
        %s307 = scalar_select %p306, %s25, 1
        %s308 = smul.addr %s307, 48
        %s309 = smul.addr %s308, 8
        %s310 = scalar_lea.vmem %s3, %s309
        %s311 = smul.u32 16, %s26
        %p314 = scmp.eq.s32.totalorder %s26, 0
        // Predicated region
        $region41: #{tpu_custom_call.1} parent=35 // pred_check
          %p315 = pneg %p314
        $region42: #{tpu_custom_call.1} parent=35 // pred_check_branch
          %317 = sbr.rel (%p315) target = $region44
        $region43: #{tpu_custom_call.1} parent=35 // pred_region
          %v318 = vld [vmem:[%s310] sm:$0xff]
          %v319 = vld [vmem:[%s310 + $0x8] sm:$0xff]
          %v320 = vld [vmem:[%s310 + $0x10] sm:$0xff]
          %v321 = vld [vmem:[%s310 + $0x18] sm:$0xff]
          %v322 = vld [vmem:[%s310 + $0x20] sm:$0xff]
          %v323 = vld [vmem:[%s310 + $0x28] sm:$0xff]
          %v324 = vld [vmem:[%s310 + $0x30] sm:$0xff]
          %v325 = vld [vmem:[%s310 + $0x38] sm:$0xff]
          %v326 = vld [vmem:[%s310 + $0x40] sm:$0xff]
          %v327 = vld [vmem:[%s310 + $0x48] sm:$0xff]
          %v328 = vld [vmem:[%s310 + $0x50] sm:$0xff]
          %v329 = vld [vmem:[%s310 + $0x58] sm:$0xff]
          %v330 = vld [vmem:[%s310 + $0x60] sm:$0xff]
          %v331 = vld [vmem:[%s310 + $0x68] sm:$0xff]
          %v332 = vld [vmem:[%s310 + $0x70] sm:$0xff]
          %v333 = vld [vmem:[%s310 + $0x78] sm:$0xff]
          %v334 = vld [vmem:[%s310 + $0x80] sm:$0xff]
          %v335 = vld [vmem:[%s310 + $0x88] sm:$0xff]
          %v336 = vld [vmem:[%s310 + $0x90] sm:$0xff]
          %v337 = vld [vmem:[%s310 + $0x98] sm:$0xff]
          %v338 = vld [vmem:[%s310 + $0xa0] sm:$0xff]
          %v339 = vld [vmem:[%s310 + $0xa8] sm:$0xff]
          %v340 = vld [vmem:[%s310 + $0xb0] sm:$0xff]
          %v341 = vld [vmem:[%s310 + $0xb8] sm:$0xff]
          %v342 = vld [vmem:[%s310 + $0xc0] sm:$0xff]
          %v343 = vld [vmem:[%s310 + $0xc8] sm:$0xff]
          %v344 = vld [vmem:[%s310 + $0xd0] sm:$0xff]
          %v345 = vld [vmem:[%s310 + $0xd8] sm:$0xff]
          %v346 = vld [vmem:[%s310 + $0xe0] sm:$0xff]
          %v347 = vld [vmem:[%s310 + $0xe8] sm:$0xff]
          %v348 = vld [vmem:[%s310 + $0xf0] sm:$0xff]
          %v349 = vld [vmem:[%s310 + $0xf8] sm:$0xff]
          %v350 = vld [vmem:[%s310 + $0x100] sm:$0xff]
          %v351 = vld [vmem:[%s310 + $0x108] sm:$0xff]
          %v352 = vld [vmem:[%s310 + $0x110] sm:$0xff]
          %v353 = vld [vmem:[%s310 + $0x118] sm:$0xff]
          %v354 = vld [vmem:[%s310 + $0x120] sm:$0xff]
          %v355 = vld [vmem:[%s310 + $0x128] sm:$0xff]
          %v356 = vld [vmem:[%s310 + $0x130] sm:$0xff]
          %v357 = vld [vmem:[%s310 + $0x138] sm:$0xff]
          %v358 = vld [vmem:[%s310 + $0x140] sm:$0xff]
          %v359 = vld [vmem:[%s310 + $0x148] sm:$0xff]
          %v360 = vld [vmem:[%s310 + $0x150] sm:$0xff]
          %v361 = vld [vmem:[%s310 + $0x158] sm:$0xff]
          %v362 = vld [vmem:[%s310 + $0x160] sm:$0xff]
          %v363 = vld [vmem:[%s310 + $0x168] sm:$0xff]
          %v364 = vld [vmem:[%s310 + $0x170] sm:$0xff]
          %v365 = vld [vmem:[%s310 + $0x178] sm:$0xff]
          %v366 = vpack.c.bf16 %v318, %v318
          %v367 = vpack.c.bf16 %v319, %v319
          %v368 = vpack.c.bf16 %v320, %v320
          %v369 = vpack.c.bf16 %v321, %v321
          %v370 = vpack.c.bf16 %v322, %v322
          %v371 = vpack.c.bf16 %v323, %v323
          %v372 = vpack.c.bf16 %v324, %v324
          %v373 = vpack.c.bf16 %v325, %v325
          %v374 = vpack.c.bf16 %v326, %v326
          %v375 = vpack.c.bf16 %v327, %v327
          %v376 = vpack.c.bf16 %v328, %v328
          %v377 = vpack.c.bf16 %v329, %v329
          %v378 = vpack.c.bf16 %v330, %v330
          %v379 = vpack.c.bf16 %v331, %v331
          %v380 = vpack.c.bf16 %v332, %v332
          %v381 = vpack.c.bf16 %v333, %v333
          %v382 = vpack.c.bf16 %v334, %v334
          %v383 = vpack.c.bf16 %v335, %v335
          %v384 = vpack.c.bf16 %v336, %v336
          %v385 = vpack.c.bf16 %v337, %v337
          %v386 = vpack.c.bf16 %v338, %v338
          %v387 = vpack.c.bf16 %v339, %v339
          %v388 = vpack.c.bf16 %v340, %v340
          %v389 = vpack.c.bf16 %v341, %v341
          %v390 = vpack.c.bf16 %v342, %v342
          %v391 = vpack.c.bf16 %v343, %v343
          %v392 = vpack.c.bf16 %v344, %v344
          %v393 = vpack.c.bf16 %v345, %v345
          %v394 = vpack.c.bf16 %v346, %v346
          %v395 = vpack.c.bf16 %v347, %v347
          %v396 = vpack.c.bf16 %v348, %v348
          %v397 = vpack.c.bf16 %v349, %v349
          %v398 = vpack.c.bf16 %v350, %v350
          %v399 = vpack.c.bf16 %v351, %v351
          %v400 = vpack.c.bf16 %v352, %v352
          %v401 = vpack.c.bf16 %v353, %v353
          %v402 = vpack.c.bf16 %v354, %v354
          %v403 = vpack.c.bf16 %v355, %v355
          %v404 = vpack.c.bf16 %v356, %v356
          %v405 = vpack.c.bf16 %v357, %v357
          %v406 = vpack.c.bf16 %v358, %v358
          %v407 = vpack.c.bf16 %v359, %v359
          %v408 = vpack.c.bf16 %v360, %v360
          %v409 = vpack.c.bf16 %v361, %v361
          %v410 = vpack.c.bf16 %v362, %v362
          %v411 = vpack.c.bf16 %v363, %v363
          %v412 = vpack.c.bf16 %v364, %v364
          %v413 = vpack.c.bf16 %v365, %v365
          %414 = vst [vmem:[#allocation2] sm:$0xf] %v366
          %415 = vst [vmem:[#allocation2 + $0x4] sm:$0xf] %v367
          %416 = vst [vmem:[#allocation2 + $0x8] sm:$0xf] %v368
          %417 = vst [vmem:[#allocation2 + $0xc] sm:$0xf] %v369
          %418 = vst [vmem:[#allocation2 + $0x10] sm:$0xf] %v370
          %419 = vst [vmem:[#allocation2 + $0x14] sm:$0xf] %v371
          %420 = vst [vmem:[#allocation2 + $0x18] sm:$0xf] %v372
          %421 = vst [vmem:[#allocation2 + $0x1c] sm:$0xf] %v373
          %422 = vst [vmem:[#allocation2 + $0x20] sm:$0xf] %v374
          %423 = vst [vmem:[#allocation2 + $0x24] sm:$0xf] %v375
          %424 = vst [vmem:[#allocation2 + $0x28] sm:$0xf] %v376
          %425 = vst [vmem:[#allocation2 + $0x2c] sm:$0xf] %v377
          %426 = vst [vmem:[#allocation2 + $0x30] sm:$0xf] %v378
          %427 = vst [vmem:[#allocation2 + $0x34] sm:$0xf] %v379
          %428 = vst [vmem:[#allocation2 + $0x38] sm:$0xf] %v380
          %429 = vst [vmem:[#allocation2 + $0x3c] sm:$0xf] %v381
          %430 = vst [vmem:[#allocation2 + $0x40] sm:$0xf] %v382
          %431 = vst [vmem:[#allocation2 + $0x44] sm:$0xf] %v383
          %432 = vst [vmem:[#allocation2 + $0x48] sm:$0xf] %v384
          %433 = vst [vmem:[#allocation2 + $0x4c] sm:$0xf] %v385
          %434 = vst [vmem:[#allocation2 + $0x50] sm:$0xf] %v386
          %435 = vst [vmem:[#allocation2 + $0x54] sm:$0xf] %v387
          %436 = vst [vmem:[#allocation2 + $0x58] sm:$0xf] %v388
          %437 = vst [vmem:[#allocation2 + $0x5c] sm:$0xf] %v389
          %438 = vst [vmem:[#allocation2 + $0x60] sm:$0xf] %v390
          %439 = vst [vmem:[#allocation2 + $0x64] sm:$0xf] %v391
          %440 = vst [vmem:[#allocation2 + $0x68] sm:$0xf] %v392
          %441 = vst [vmem:[#allocation2 + $0x6c] sm:$0xf] %v393
          %442 = vst [vmem:[#allocation2 + $0x70] sm:$0xf] %v394
          %443 = vst [vmem:[#allocation2 + $0x74] sm:$0xf] %v395
          %444 = vst [vmem:[#allocation2 + $0x78] sm:$0xf] %v396
          %445 = vst [vmem:[#allocation2 + $0x7c] sm:$0xf] %v397
          %446 = vst [vmem:[#allocation2 + $0x80] sm:$0xf] %v398
          %447 = vst [vmem:[#allocation2 + $0x84] sm:$0xf] %v399
          %448 = vst [vmem:[#allocation2 + $0x88] sm:$0xf] %v400
          %449 = vst [vmem:[#allocation2 + $0x8c] sm:$0xf] %v401
          %450 = vst [vmem:[#allocation2 + $0x90] sm:$0xf] %v402
          %451 = vst [vmem:[#allocation2 + $0x94] sm:$0xf] %v403
          %452 = vst [vmem:[#allocation2 + $0x98] sm:$0xf] %v404
          %453 = vst [vmem:[#allocation2 + $0x9c] sm:$0xf] %v405
          %454 = vst [vmem:[#allocation2 + $0xa0] sm:$0xf] %v406
          %455 = vst [vmem:[#allocation2 + $0xa4] sm:$0xf] %v407
          %456 = vst [vmem:[#allocation2 + $0xa8] sm:$0xf] %v408
          %457 = vst [vmem:[#allocation2 + $0xac] sm:$0xf] %v409
          %458 = vst [vmem:[#allocation2 + $0xb0] sm:$0xf] %v410
          %459 = vst [vmem:[#allocation2 + $0xb4] sm:$0xf] %v411
          %460 = vst [vmem:[#allocation2 + $0xb8] sm:$0xf] %v412
          %461 = vst [vmem:[#allocation2 + $0xbc] sm:$0xf] %v413
        $region44: #{tpu_custom_call.1} parent=35 // pred_fallthru
          _
        %v462 = vld [vmem:[%s299] sm:$0xff]
        %v463 = vld [vmem:[%s299 + $0x8] sm:$0xff]
        %v464 = vld [vmem:[%s299 + $0x10] sm:$0xff]
        %v465 = vld [vmem:[%s299 + $0x18] sm:$0xff]
        %v466 = vld [vmem:[%s299 + $0x20] sm:$0xff]
        %v467 = vld [vmem:[%s299 + $0x28] sm:$0xff]
        %v468 = vld [vmem:[%s299 + $0x30] sm:$0xff]
        %v469 = vld [vmem:[%s299 + $0x38] sm:$0xff]
        %v470 = vld [vmem:[%s299 + $0x40] sm:$0xff]
        %v471 = vld [vmem:[%s299 + $0x48] sm:$0xff]
        %v472 = vld [vmem:[%s299 + $0x50] sm:$0xff]
        %v473 = vld [vmem:[%s299 + $0x58] sm:$0xff]
        %v474 = vld [vmem:[%s299 + $0x60] sm:$0xff]
        %v475 = vld [vmem:[%s299 + $0x68] sm:$0xff]
        %v476 = vld [vmem:[%s299 + $0x70] sm:$0xff]
        %v477 = vld [vmem:[%s299 + $0x78] sm:$0xff]
        %vm478 = vcmp.eq.s32.totalorder %v462, 0
        %vm479 = vcmp.eq.s32.totalorder %v463, 0
        %vm480 = vcmp.eq.s32.totalorder %v464, 0
        %vm481 = vcmp.eq.s32.totalorder %v465, 0
        %vm482 = vcmp.eq.s32.totalorder %v466, 0
        %vm483 = vcmp.eq.s32.totalorder %v467, 0
        %vm484 = vcmp.eq.s32.totalorder %v468, 0
        %vm485 = vcmp.eq.s32.totalorder %v469, 0
        %vm486 = vcmp.eq.s32.totalorder %v470, 0
        %vm487 = vcmp.eq.s32.totalorder %v471, 0
        %vm488 = vcmp.eq.s32.totalorder %v472, 0
        %vm489 = vcmp.eq.s32.totalorder %v473, 0
        %vm490 = vcmp.eq.s32.totalorder %v474, 0
        %vm491 = vcmp.eq.s32.totalorder %v475, 0
        %vm492 = vcmp.eq.s32.totalorder %v476, 0
        %vm493 = vcmp.eq.s32.totalorder %v477, 0
        %s494 = smul.u32 %s26, 128
        %s495 = scalar_lea.vmem %s310, %s494
        %v496 = vld [vmem:[%s495] sm:$0xff]
        %v497 = vld [vmem:[%s495 + $0x8] sm:$0xff]
        %v498 = vld [vmem:[%s495 + $0x10] sm:$0xff]
        %v499 = vld [vmem:[%s495 + $0x18] sm:$0xff]
        %v500 = vld [vmem:[%s495 + $0x20] sm:$0xff]
        %v501 = vld [vmem:[%s495 + $0x28] sm:$0xff]
        %v502 = vld [vmem:[%s495 + $0x30] sm:$0xff]
        %v503 = vld [vmem:[%s495 + $0x38] sm:$0xff]
        %v504 = vld [vmem:[%s495 + $0x40] sm:$0xff]
        %v505 = vld [vmem:[%s495 + $0x48] sm:$0xff]
        %v506 = vld [vmem:[%s495 + $0x50] sm:$0xff]
        %v507 = vld [vmem:[%s495 + $0x58] sm:$0xff]
        %v508 = vld [vmem:[%s495 + $0x60] sm:$0xff]
        %v509 = vld [vmem:[%s495 + $0x68] sm:$0xff]
        %v510 = vld [vmem:[%s495 + $0x70] sm:$0xff]
        %v511 = vld [vmem:[%s495 + $0x78] sm:$0xff]
        %v512 = vsel %vm478, 1, 0
        %v513 = vsel %vm479, 1, 0
        %v514 = vsel %vm480, 1, 0
        %v515 = vsel %vm481, 1, 0
        %v516 = vsel %vm482, 1, 0
        %v517 = vsel %vm483, 1, 0
        %v518 = vsel %vm484, 1, 0
        %v519 = vsel %vm485, 1, 0
        %v520 = vsel %vm486, 1, 0
        %v521 = vsel %vm487, 1, 0
        %v522 = vsel %vm488, 1, 0
        %v523 = vsel %vm489, 1, 0
        %v524 = vsel %vm490, 1, 0
        %v525 = vsel %vm491, 1, 0
        %v526 = vsel %vm492, 1, 0
        %v527 = vsel %vm493, 1, 0
        %vm528 = vcmask 7168
        %v529 = vsel %vm528, %v512, 0
        %v530 = vsel %vm528, %v513, 0
        %v531 = vsel %vm528, %v514, 0
        %v532 = vsel %vm528, %v515, 0
        %v533 = vsel %vm528, %v516, 0
        %v534 = vadd.s32 %v529, %v533
        %v535 = vsel %vm528, %v517, 0
        %v536 = vadd.s32 %v530, %v535
        %v537 = vsel %vm528, %v518, 0
        %v538 = vadd.s32 %v531, %v537
        %v539 = vsel %vm528, %v519, 0
        %v540 = vadd.s32 %v532, %v539
        %v541 = vsel %vm528, %v520, 0
        %v542 = vadd.s32 %v534, %v541
        %v543 = vsel %vm528, %v521, 0
        %v544 = vadd.s32 %v536, %v543
        %v545 = vsel %vm528, %v522, 0
        %v546 = vadd.s32 %v538, %v545
        %v547 = vsel %vm528, %v523, 0
        %v548 = vadd.s32 %v540, %v547
        %v549 = vsel %vm528, %v524, 0
        %v550 = vadd.s32 %v542, %v549
        %v551 = vsel %vm528, %v525, 0
        %v552 = vadd.s32 %v544, %v551
        %v553 = vsel %vm528, %v526, 0
        %v554 = vadd.s32 %v546, %v553
        %v555 = vsel %vm528, %v527, 0
        %v556 = vadd.s32 %v548, %v555
        %v557 = vadd.s32 %v550, %v552
        %v558 = vadd.s32 %v554, %v556
        %v559 = vadd.s32 %v557, %v558
        %v560 = vand.u32 %v559, 65535
        %v561 = vshrl.u32 %v559, 16
        %v562 = vcvt.s32.f32 %v560
        %v563 = vcvt.s32.f32 %v561
        %564 = vadd.xlane.f32.xlu0 %v562
        %v565 = vpop.xlane.xlu0 %564
        %566 = vadd.xlane.f32.xlu0 %v563
        %v567 = vpop.xlane.xlu0 %566
        %v568 = vcvt.f32.s32 %v565
        %v569 = vcvt.f32.s32 %v567
        %v570 = vshll.u32 %v569, 16
        %v571 = vadd.s32 %v570, %v568
        %v572 = vrot.slane %v571, 4
        %v573 = vadd.s32 %v571, %v572
        %v574 = vrot.slane %v573, 2
        %v575 = vadd.s32 %v573, %v574
        %v576 = vrot.slane %v575, 1
        %v577 = vadd.s32 %v575, %v576
        %s578 = vtos %v577
        %p579 = scmp.gt.s32.totalorder %s578, 0
        // Predicated region
        $region45: #{tpu_custom_call.1} parent=35 // pred_check
          %p580 = pneg %p579
        $region46: #{tpu_custom_call.1} parent=35 // pred_check_branch
          %582 = sbr.rel (%p580) target = $region48
        $region47: #{tpu_custom_call.1} parent=35 // pred_region
          %v583 = vld [vmem:[%s304] sm:$0x7]
          %vm584 = vcmp.ge.s32.totalorder %v583, 2
          %v585 = vld [vmem:[%s247] sm:$0xff]
          %v586 = vld [vmem:[%s247 + $0x8] sm:$0xff]
          %v587 = vld [vmem:[%s247 + $0x10] sm:$0xff]
          %v588 = vld [vmem:[%s247 + $0x18] sm:$0xff]
          %v589 = vld [vmem:[%s247 + $0x20] sm:$0xff]
          %v590 = vld [vmem:[%s247 + $0x28] sm:$0xff]
          %v591 = vld [vmem:[%s247 + $0x30] sm:$0xff]
          %v592 = vld [vmem:[%s247 + $0x38] sm:$0xff]
          %v593 = vld [vmem:[%s247 + $0x40] sm:$0xff]
          %v594 = vld [vmem:[%s247 + $0x48] sm:$0xff]
          %v595 = vld [vmem:[%s247 + $0x50] sm:$0xff]
          %v596 = vld [vmem:[%s247 + $0x58] sm:$0xff]
          %vm597 = vnez %v585
          %vm598 = vnez %v586
          %vm599 = vnez %v587
          %vm600 = vnez %v588
          %vm601 = vnez %v589
          %vm602 = vnez %v590
          %vm603 = vnez %v591
          %vm604 = vnez %v592
          %vm605 = vnez %v593
          %vm606 = vnez %v594
          %vm607 = vnez %v595
          %vm608 = vnez %v596
          %609 = vset.pattern.permute.xlu0 0
          %610 = vperm.xlu0 %609, %v512
          %v611 = vpop.permute.xlu0 %610
          %612 = vset.pattern.permute.xlu0 0
          %613 = vperm.xlu0 %612, %v513
          %v614 = vpop.permute.xlu0 %613
          %615 = vset.pattern.permute.xlu0 0
          %616 = vperm.xlu0 %615, %v514
          %v617 = vpop.permute.xlu0 %616
          %618 = vset.pattern.permute.xlu0 0
          %619 = vperm.xlu0 %618, %v515
          %v620 = vpop.permute.xlu0 %619
          %621 = vset.pattern.permute.xlu0 0
          %622 = vperm.xlu0 %621, %v516
          %v623 = vpop.permute.xlu0 %622
          %624 = vset.pattern.permute.xlu0 0
          %625 = vperm.xlu0 %624, %v517
          %v626 = vpop.permute.xlu0 %625
          %627 = vset.pattern.permute.xlu0 0
          %628 = vperm.xlu0 %627, %v518
          %v629 = vpop.permute.xlu0 %628
          %630 = vset.pattern.permute.xlu0 0
          %631 = vperm.xlu0 %630, %v519
          %v632 = vpop.permute.xlu0 %631
          %633 = vset.pattern.permute.xlu0 0
          %634 = vperm.xlu0 %633, %v520
          %v635 = vpop.permute.xlu0 %634
          %636 = vset.pattern.permute.xlu0 0
          %637 = vperm.xlu0 %636, %v521
          %v638 = vpop.permute.xlu0 %637
          %639 = vset.pattern.permute.xlu0 0
          %640 = vperm.xlu0 %639, %v522
          %v641 = vpop.permute.xlu0 %640
          %642 = vset.pattern.permute.xlu0 0
          %643 = vperm.xlu0 %642, %v523
          %v644 = vpop.permute.xlu0 %643
          %645 = vset.pattern.permute.xlu0 0
          %646 = vperm.xlu0 %645, %v524
          %v647 = vpop.permute.xlu0 %646
          %648 = vset.pattern.permute.xlu0 0
          %649 = vperm.xlu0 %648, %v525
          %v650 = vpop.permute.xlu0 %649
          %651 = vset.pattern.permute.xlu0 0
          %652 = vperm.xlu0 %651, %v526
          %v653 = vpop.permute.xlu0 %652
          %654 = vset.pattern.permute.xlu0 0
          %655 = vperm.xlu0 %654, %v527
          %v656 = vpop.permute.xlu0 %655
          %vm657 = vcmp.eq.s32.totalorder %v611, 1
          %vm658 = vcmp.eq.s32.totalorder %v614, 1
          %vm659 = vcmp.eq.s32.totalorder %v617, 1
          %vm660 = vcmp.eq.s32.totalorder %v620, 1
          %vm661 = vcmp.eq.s32.totalorder %v623, 1
          %vm662 = vcmp.eq.s32.totalorder %v626, 1
          %vm663 = vcmp.eq.s32.totalorder %v629, 1
          %vm664 = vcmp.eq.s32.totalorder %v632, 1
          %vm665 = vcmp.eq.s32.totalorder %v635, 1
          %vm666 = vcmp.eq.s32.totalorder %v638, 1
          %vm667 = vcmp.eq.s32.totalorder %v641, 1
          %vm668 = vcmp.eq.s32.totalorder %v644, 1
          %vm669 = vcmp.eq.s32.totalorder %v647, 1
          %vm670 = vcmp.eq.s32.totalorder %v650, 1
          %vm671 = vcmp.eq.s32.totalorder %v653, 1
          %vm672 = vcmp.eq.s32.totalorder %v656, 1
          %v673 = vsel %vm584, 1, 0
          %v674 = vperm.slane %v673, 0
          %v675 = vperm.slane %v673, 1
          %v676 = vperm.slane %v673, 2
          %vm677 = vcmp.eq.s32.totalorder %v674, 1
          %vm678 = vcmp.eq.s32.totalorder %v675, 1
          %vm679 = vcmp.eq.s32.totalorder %v676, 1
          %vm680 = vmand %vm657, %vm677
          %vm681 = vmand %vm657, %vm678
          %vm682 = vmand %vm657, %vm679
          %vm683 = vmand %vm658, %vm677
          %vm684 = vmand %vm658, %vm678
          %vm685 = vmand %vm658, %vm679
          %vm686 = vmand %vm659, %vm677
          %vm687 = vmand %vm659, %vm678
          %vm688 = vmand %vm659, %vm679
          %vm689 = vmand %vm660, %vm677
          %vm690 = vmand %vm660, %vm678
          %vm691 = vmand %vm660, %vm679
          %vm692 = vmand %vm661, %vm677
          %vm693 = vmand %vm661, %vm678
          %vm694 = vmand %vm661, %vm679
          %vm695 = vmand %vm662, %vm677
          %vm696 = vmand %vm662, %vm678
          %vm697 = vmand %vm662, %vm679
          %vm698 = vmand %vm663, %vm677
          %vm699 = vmand %vm663, %vm678
          %vm700 = vmand %vm663, %vm679
          %vm701 = vmand %vm664, %vm677
          %vm702 = vmand %vm664, %vm678
          %vm703 = vmand %vm664, %vm679
          %vm704 = vmand %vm665, %vm677
          %vm705 = vmand %vm665, %vm678
          %vm706 = vmand %vm665, %vm679
          %vm707 = vmand %vm666, %vm677
          %vm708 = vmand %vm666, %vm678
          %vm709 = vmand %vm666, %vm679
          %vm710 = vmand %vm667, %vm677
          %vm711 = vmand %vm667, %vm678
          %vm712 = vmand %vm667, %vm679
          %vm713 = vmand %vm668, %vm677
          %vm714 = vmand %vm668, %vm678
          %vm715 = vmand %vm668, %vm679
          %vm716 = vmand %vm669, %vm677
          %vm717 = vmand %vm669, %vm678
          %vm718 = vmand %vm669, %vm679
          %vm719 = vmand %vm670, %vm677
          %vm720 = vmand %vm670, %vm678
          %vm721 = vmand %vm670, %vm679
          %vm722 = vmand %vm671, %vm677
          %vm723 = vmand %vm671, %vm678
          %vm724 = vmand %vm671, %vm679
          %vm725 = vmand %vm672, %vm677
          %vm726 = vmand %vm672, %vm678
          %vm727 = vmand %vm672, %vm679
          %v728 = vsel %vm597, 16843009, 0
          %v729 = vsel %vm598, 16843009, 0
          %v730 = vsel %vm599, 16843009, 0
          %v731 = vsel %vm600, 16843009, 0
          %v732 = vsel %vm601, 16843009, 0
          %v733 = vsel %vm602, 16843009, 0
          %v734 = vsel %vm603, 16843009, 0
          %v735 = vsel %vm604, 16843009, 0
          %v736 = vsel %vm605, 16843009, 0
          %v737 = vsel %vm606, 16843009, 0
          %v738 = vsel %vm607, 16843009, 0
          %v739 = vsel %vm608, 16843009, 0
          %v740 = vunpack.c.0.s8 %v728
          %v741 = vunpack.c.0.s8 %v729
          %v742 = vunpack.c.0.s8 %v730
          %v743 = vunpack.c.1.s8 %v728
          %v744 = vunpack.c.1.s8 %v729
          %v745 = vunpack.c.1.s8 %v730
          %v746 = vunpack.c.2.s8 %v728
          %v747 = vunpack.c.2.s8 %v729
          %v748 = vunpack.c.2.s8 %v730
          %v749 = vunpack.c.3.s8 %v728
          %v750 = vunpack.c.3.s8 %v729
          %v751 = vunpack.c.3.s8 %v730
          %v752 = vunpack.c.0.s8 %v731
          %v753 = vunpack.c.0.s8 %v732
          %v754 = vunpack.c.0.s8 %v733
          %v755 = vunpack.c.1.s8 %v731
          %v756 = vunpack.c.1.s8 %v732
          %v757 = vunpack.c.1.s8 %v733
          %v758 = vunpack.c.2.s8 %v731
          %v759 = vunpack.c.2.s8 %v732
          %v760 = vunpack.c.2.s8 %v733
          %v761 = vunpack.c.3.s8 %v731
          %v762 = vunpack.c.3.s8 %v732
          %v763 = vunpack.c.3.s8 %v733
          %v764 = vunpack.c.0.s8 %v734
          %v765 = vunpack.c.0.s8 %v735
          %v766 = vunpack.c.0.s8 %v736
          %v767 = vunpack.c.1.s8 %v734
          %v768 = vunpack.c.1.s8 %v735
          %v769 = vunpack.c.1.s8 %v736
          %v770 = vunpack.c.2.s8 %v734
          %v771 = vunpack.c.2.s8 %v735
          %v772 = vunpack.c.2.s8 %v736
          %v773 = vunpack.c.3.s8 %v734
          %v774 = vunpack.c.3.s8 %v735
          %v775 = vunpack.c.3.s8 %v736
          %v776 = vunpack.c.0.s8 %v737
          %v777 = vunpack.c.0.s8 %v738
          %v778 = vunpack.c.0.s8 %v739
          %v779 = vunpack.c.1.s8 %v737
          %v780 = vunpack.c.1.s8 %v738
          %v781 = vunpack.c.1.s8 %v739
          %v782 = vunpack.c.2.s8 %v737
          %v783 = vunpack.c.2.s8 %v738
          %v784 = vunpack.c.2.s8 %v739
          %v785 = vunpack.c.3.s8 %v737
          %v786 = vunpack.c.3.s8 %v738
          %v787 = vunpack.c.3.s8 %v739
          %v788 = vpack.c.b16 %v741, %v740
          %v789 = vpack.c.b16 %v742, %v742
          %v790 = vpack.c.b8 %v789, %v788
          %v791 = vpack.c.b16 %v744, %v743
          %v792 = vpack.c.b16 %v745, %v745
          %v793 = vpack.c.b8 %v792, %v791
          %v794 = vpack.c.b16 %v747, %v746
          %v795 = vpack.c.b16 %v748, %v748
          %v796 = vpack.c.b8 %v795, %v794
          %v797 = vpack.c.b16 %v750, %v749
          %v798 = vpack.c.b16 %v751, %v751
          %v799 = vpack.c.b8 %v798, %v797
          %v800 = vpack.c.b16 %v753, %v752
          %v801 = vpack.c.b16 %v754, %v754
          %v802 = vpack.c.b8 %v801, %v800
          %v803 = vpack.c.b16 %v756, %v755
          %v804 = vpack.c.b16 %v757, %v757
          %v805 = vpack.c.b8 %v804, %v803
          %v806 = vpack.c.b16 %v759, %v758
          %v807 = vpack.c.b16 %v760, %v760
          %v808 = vpack.c.b8 %v807, %v806
          %v809 = vpack.c.b16 %v762, %v761
          %v810 = vpack.c.b16 %v763, %v763
          %v811 = vpack.c.b8 %v810, %v809
          %v812 = vpack.c.b16 %v765, %v764
          %v813 = vpack.c.b16 %v766, %v766
          %v814 = vpack.c.b8 %v813, %v812
          %v815 = vpack.c.b16 %v768, %v767
          %v816 = vpack.c.b16 %v769, %v769
          %v817 = vpack.c.b8 %v816, %v815
          %v818 = vpack.c.b16 %v771, %v770
          %v819 = vpack.c.b16 %v772, %v772
          %v820 = vpack.c.b8 %v819, %v818
          %v821 = vpack.c.b16 %v774, %v773
          %v822 = vpack.c.b16 %v775, %v775
          %v823 = vpack.c.b8 %v822, %v821
          %v824 = vpack.c.b16 %v777, %v776
          %v825 = vpack.c.b16 %v778, %v778
          %v826 = vpack.c.b8 %v825, %v824
          %v827 = vpack.c.b16 %v780, %v779
          %v828 = vpack.c.b16 %v781, %v781
          %v829 = vpack.c.b8 %v828, %v827
          %v830 = vpack.c.b16 %v783, %v782
          %v831 = vpack.c.b16 %v784, %v784
          %v832 = vpack.c.b8 %v831, %v830
          %v833 = vpack.c.b16 %v786, %v785
          %v834 = vpack.c.b16 %v787, %v787
          %v835 = vpack.c.b8 %v834, %v833
          %vm836 = vnez %v790
          %vm837 = vnez %v793
          %vm838 = vnez %v796
          %vm839 = vnez %v799
          %vm840 = vnez %v802
          %vm841 = vnez %v805
          %vm842 = vnez %v808
          %vm843 = vnez %v811
          %vm844 = vnez %v814
          %vm845 = vnez %v817
          %vm846 = vnez %v820
          %vm847 = vnez %v823
          %vm848 = vnez %v826
          %vm849 = vnez %v829
          %vm850 = vnez %v832
          %vm851 = vnez %v835
          %v852 = vsel %vm836, 16843009, 0
          %v853 = vsel %vm837, 16843009, 0
          %v854 = vsel %vm838, 16843009, 0
          %v855 = vsel %vm839, 16843009, 0
          %v856 = vsel %vm840, 16843009, 0
          %v857 = vsel %vm841, 16843009, 0
          %v858 = vsel %vm842, 16843009, 0
          %v859 = vsel %vm843, 16843009, 0
          %v860 = vsel %vm844, 16843009, 0
          %v861 = vsel %vm845, 16843009, 0
          %v862 = vsel %vm846, 16843009, 0
          %v863 = vsel %vm847, 16843009, 0
          %v864 = vsel %vm848, 16843009, 0
          %v865 = vsel %vm849, 16843009, 0
          %v866 = vsel %vm850, 16843009, 0
          %v867 = vsel %vm851, 16843009, 0
          %v868 = vunpack.c.0.s8 %v852
          %v869 = vunpack.c.1.s8 %v852
          %v870 = vunpack.c.2.s8 %v852
          %v871 = vunpack.c.0.s8 %v853
          %v872 = vunpack.c.1.s8 %v853
          %v873 = vunpack.c.2.s8 %v853
          %v874 = vunpack.c.0.s8 %v854
          %v875 = vunpack.c.1.s8 %v854
          %v876 = vunpack.c.2.s8 %v854
          %v877 = vunpack.c.0.s8 %v855
          %v878 = vunpack.c.1.s8 %v855
          %v879 = vunpack.c.2.s8 %v855
          %v880 = vunpack.c.0.s8 %v856
          %v881 = vunpack.c.1.s8 %v856
          %v882 = vunpack.c.2.s8 %v856
          %v883 = vunpack.c.0.s8 %v857
          %v884 = vunpack.c.1.s8 %v857
          %v885 = vunpack.c.2.s8 %v857
          %v886 = vunpack.c.0.s8 %v858
          %v887 = vunpack.c.1.s8 %v858
          %v888 = vunpack.c.2.s8 %v858
          %v889 = vunpack.c.0.s8 %v859
          %v890 = vunpack.c.1.s8 %v859
          %v891 = vunpack.c.2.s8 %v859
          %v892 = vunpack.c.0.s8 %v860
          %v893 = vunpack.c.1.s8 %v860
          %v894 = vunpack.c.2.s8 %v860
          %v895 = vunpack.c.0.s8 %v861
          %v896 = vunpack.c.1.s8 %v861
          %v897 = vunpack.c.2.s8 %v861
          %v898 = vunpack.c.0.s8 %v862
          %v899 = vunpack.c.1.s8 %v862
          %v900 = vunpack.c.2.s8 %v862
          %v901 = vunpack.c.0.s8 %v863
          %v902 = vunpack.c.1.s8 %v863
          %v903 = vunpack.c.2.s8 %v863
          %v904 = vunpack.c.0.s8 %v864
          %v905 = vunpack.c.1.s8 %v864
          %v906 = vunpack.c.2.s8 %v864
          %v907 = vunpack.c.0.s8 %v865
          %v908 = vunpack.c.1.s8 %v865
          %v909 = vunpack.c.2.s8 %v865
          %v910 = vunpack.c.0.s8 %v866
          %v911 = vunpack.c.1.s8 %v866
          %v912 = vunpack.c.2.s8 %v866
          %v913 = vunpack.c.0.s8 %v867
          %v914 = vunpack.c.1.s8 %v867
          %v915 = vunpack.c.2.s8 %v867
          %vm916 = vcmp.ne.s32.totalorder %v868, 0
          %vm917 = vcmp.ne.s32.totalorder %v869, 0
          %vm918 = vcmp.ne.s32.totalorder %v870, 0
          %vm919 = vcmp.ne.s32.totalorder %v871, 0
          %vm920 = vcmp.ne.s32.totalorder %v872, 0
          %vm921 = vcmp.ne.s32.totalorder %v873, 0
          %vm922 = vcmp.ne.s32.totalorder %v874, 0
          %vm923 = vcmp.ne.s32.totalorder %v875, 0
          %vm924 = vcmp.ne.s32.totalorder %v876, 0
          %vm925 = vcmp.ne.s32.totalorder %v877, 0
          %vm926 = vcmp.ne.s32.totalorder %v878, 0
          %vm927 = vcmp.ne.s32.totalorder %v879, 0
          %vm928 = vcmp.ne.s32.totalorder %v880, 0
          %vm929 = vcmp.ne.s32.totalorder %v881, 0
          %vm930 = vcmp.ne.s32.totalorder %v882, 0
          %vm931 = vcmp.ne.s32.totalorder %v883, 0
          %vm932 = vcmp.ne.s32.totalorder %v884, 0
          %vm933 = vcmp.ne.s32.totalorder %v885, 0
          %vm934 = vcmp.ne.s32.totalorder %v886, 0
          %vm935 = vcmp.ne.s32.totalorder %v887, 0
          %vm936 = vcmp.ne.s32.totalorder %v888, 0
          %vm937 = vcmp.ne.s32.totalorder %v889, 0
          %vm938 = vcmp.ne.s32.totalorder %v890, 0
          %vm939 = vcmp.ne.s32.totalorder %v891, 0
          %vm940 = vcmp.ne.s32.totalorder %v892, 0
          %vm941 = vcmp.ne.s32.totalorder %v893, 0
          %vm942 = vcmp.ne.s32.totalorder %v894, 0
          %vm943 = vcmp.ne.s32.totalorder %v895, 0
          %vm944 = vcmp.ne.s32.totalorder %v896, 0
          %vm945 = vcmp.ne.s32.totalorder %v897, 0
          %vm946 = vcmp.ne.s32.totalorder %v898, 0
          %vm947 = vcmp.ne.s32.totalorder %v899, 0
          %vm948 = vcmp.ne.s32.totalorder %v900, 0
          %vm949 = vcmp.ne.s32.totalorder %v901, 0
          %vm950 = vcmp.ne.s32.totalorder %v902, 0
          %vm951 = vcmp.ne.s32.totalorder %v903, 0
          %vm952 = vcmp.ne.s32.totalorder %v904, 0
          %vm953 = vcmp.ne.s32.totalorder %v905, 0
          %vm954 = vcmp.ne.s32.totalorder %v906, 0
          %vm955 = vcmp.ne.s32.totalorder %v907, 0
          %vm956 = vcmp.ne.s32.totalorder %v908, 0
          %vm957 = vcmp.ne.s32.totalorder %v909, 0
          %vm958 = vcmp.ne.s32.totalorder %v910, 0
          %vm959 = vcmp.ne.s32.totalorder %v911, 0
          %vm960 = vcmp.ne.s32.totalorder %v912, 0
          %vm961 = vcmp.ne.s32.totalorder %v913, 0
          %vm962 = vcmp.ne.s32.totalorder %v914, 0
          %vm963 = vcmp.ne.s32.totalorder %v915, 0
          %vm964 = vmand %vm680, %vm916
          %vm965 = vmand %vm681, %vm917
          %vm966 = vmand %vm682, %vm918
          %vm967 = vmand %vm683, %vm919
          %vm968 = vmand %vm684, %vm920
          %vm969 = vmand %vm685, %vm921
          %vm970 = vmand %vm686, %vm922
          %vm971 = vmand %vm687, %vm923
          %vm972 = vmand %vm688, %vm924
          %vm973 = vmand %vm689, %vm925
          %vm974 = vmand %vm690, %vm926
          %vm975 = vmand %vm691, %vm927
          %vm976 = vmand %vm692, %vm928
          %vm977 = vmand %vm693, %vm929
          %vm978 = vmand %vm694, %vm930
          %vm979 = vmand %vm695, %vm931
          %vm980 = vmand %vm696, %vm932
          %vm981 = vmand %vm697, %vm933
          %vm982 = vmand %vm698, %vm934
          %vm983 = vmand %vm699, %vm935
          %vm984 = vmand %vm700, %vm936
          %vm985 = vmand %vm701, %vm937
          %vm986 = vmand %vm702, %vm938
          %vm987 = vmand %vm703, %vm939
          %vm988 = vmand %vm704, %vm940
          %vm989 = vmand %vm705, %vm941
          %vm990 = vmand %vm706, %vm942
          %vm991 = vmand %vm707, %vm943
          %vm992 = vmand %vm708, %vm944
          %vm993 = vmand %vm709, %vm945
          %vm994 = vmand %vm710, %vm946
          %vm995 = vmand %vm711, %vm947
          %vm996 = vmand %vm712, %vm948
          %vm997 = vmand %vm713, %vm949
          %vm998 = vmand %vm714, %vm950
          %vm999 = vmand %vm715, %vm951
          %vm1000 = vmand %vm716, %vm952
          %vm1001 = vmand %vm717, %vm953
          %vm1002 = vmand %vm718, %vm954
          %vm1003 = vmand %vm719, %vm955
          %vm1004 = vmand %vm720, %vm956
          %vm1005 = vmand %vm721, %vm957
          %vm1006 = vmand %vm722, %vm958
          %vm1007 = vmand %vm723, %vm959
          %vm1008 = vmand %vm724, %vm960
          %vm1009 = vmand %vm725, %vm961
          %vm1010 = vmand %vm726, %vm962
          %vm1011 = vmand %vm727, %vm963
          %v1012 = vsel %vm964, 1, 0
          %v1013 = vsel %vm965, 1, 0
          %v1014 = vsel %vm966, 1, 0
          %v1015 = vsel %vm967, 1, 0
          %v1016 = vsel %vm968, 1, 0
          %v1017 = vsel %vm969, 1, 0
          %v1018 = vsel %vm970, 1, 0
          %v1019 = vsel %vm971, 1, 0
          %v1020 = vsel %vm972, 1, 0
          %v1021 = vsel %vm973, 1, 0
          %v1022 = vsel %vm974, 1, 0
          %v1023 = vsel %vm975, 1, 0
          %v1024 = vsel %vm976, 1, 0
          %v1025 = vsel %vm977, 1, 0
          %v1026 = vsel %vm978, 1, 0
          %v1027 = vsel %vm979, 1, 0
          %v1028 = vsel %vm980, 1, 0
          %v1029 = vsel %vm981, 1, 0
          %v1030 = vsel %vm982, 1, 0
          %v1031 = vsel %vm983, 1, 0
          %v1032 = vsel %vm984, 1, 0
          %v1033 = vsel %vm985, 1, 0
          %v1034 = vsel %vm986, 1, 0
          %v1035 = vsel %vm987, 1, 0
          %v1036 = vsel %vm988, 1, 0
          %v1037 = vsel %vm989, 1, 0
          %v1038 = vsel %vm990, 1, 0
          %v1039 = vsel %vm991, 1, 0
          %v1040 = vsel %vm992, 1, 0
          %v1041 = vsel %vm993, 1, 0
          %v1042 = vsel %vm994, 1, 0
          %v1043 = vsel %vm995, 1, 0
          %v1044 = vsel %vm996, 1, 0
          %v1045 = vsel %vm997, 1, 0
          %v1046 = vsel %vm998, 1, 0
          %v1047 = vsel %vm999, 1, 0
          %v1048 = vsel %vm1000, 1, 0
          %v1049 = vsel %vm1001, 1, 0
          %v1050 = vsel %vm1002, 1, 0
          %v1051 = vsel %vm1003, 1, 0
          %v1052 = vsel %vm1004, 1, 0
          %v1053 = vsel %vm1005, 1, 0
          %v1054 = vsel %vm1006, 1, 0
          %v1055 = vsel %vm1007, 1, 0
          %v1056 = vsel %vm1008, 1, 0
          %v1057 = vsel %vm1009, 1, 0
          %v1058 = vsel %vm1010, 1, 0
          %v1059 = vsel %vm1011, 1, 0
          %v1060 = vcvt.s32.f32 %v1012
          %v1061 = vcvt.s32.f32 %v1013
          %v1062 = vcvt.s32.f32 %v1014
          %v1063 = vcvt.s32.f32 %v1015
          %v1064 = vcvt.s32.f32 %v1016
          %v1065 = vcvt.s32.f32 %v1017
          %v1066 = vcvt.s32.f32 %v1018
          %v1067 = vcvt.s32.f32 %v1019
          %v1068 = vcvt.s32.f32 %v1020
          %v1069 = vcvt.s32.f32 %v1021
          %v1070 = vcvt.s32.f32 %v1022
          %v1071 = vcvt.s32.f32 %v1023
          %v1072 = vcvt.s32.f32 %v1024
          %v1073 = vcvt.s32.f32 %v1025
          %v1074 = vcvt.s32.f32 %v1026
          %v1075 = vcvt.s32.f32 %v1027
          %v1076 = vcvt.s32.f32 %v1028
          %v1077 = vcvt.s32.f32 %v1029
          %v1078 = vcvt.s32.f32 %v1030
          %v1079 = vcvt.s32.f32 %v1031
          %v1080 = vcvt.s32.f32 %v1032
          %v1081 = vcvt.s32.f32 %v1033
          %v1082 = vcvt.s32.f32 %v1034
          %v1083 = vcvt.s32.f32 %v1035
          %v1084 = vcvt.s32.f32 %v1036
          %v1085 = vcvt.s32.f32 %v1037
          %v1086 = vcvt.s32.f32 %v1038
          %v1087 = vcvt.s32.f32 %v1039
          %v1088 = vcvt.s32.f32 %v1040
          %v1089 = vcvt.s32.f32 %v1041
          %v1090 = vcvt.s32.f32 %v1042
          %v1091 = vcvt.s32.f32 %v1043
          %v1092 = vcvt.s32.f32 %v1044
          %v1093 = vcvt.s32.f32 %v1045
          %v1094 = vcvt.s32.f32 %v1046
          %v1095 = vcvt.s32.f32 %v1047
          %v1096 = vcvt.s32.f32 %v1048
          %v1097 = vcvt.s32.f32 %v1049
          %v1098 = vcvt.s32.f32 %v1050
          %v1099 = vcvt.s32.f32 %v1051
          %v1100 = vcvt.s32.f32 %v1052
          %v1101 = vcvt.s32.f32 %v1053
          %v1102 = vcvt.s32.f32 %v1054
          %v1103 = vcvt.s32.f32 %v1055
          %v1104 = vcvt.s32.f32 %v1056
          %v1105 = vcvt.s32.f32 %v1057
          %v1106 = vcvt.s32.f32 %v1058
          %v1107 = vcvt.s32.f32 %v1059
          %v1108 = vpack.c.bf16 %v1063, %v1060
          %v1109 = vpack.c.bf16 %v1064, %v1061
          %v1110 = vpack.c.bf16 %v1065, %v1062
          %v1111 = vpack.c.bf16 %v1069, %v1066
          %v1112 = vpack.c.bf16 %v1070, %v1067
          %v1113 = vpack.c.bf16 %v1071, %v1068
          %v1114 = vpack.c.bf16 %v1075, %v1072
          %v1115 = vpack.c.bf16 %v1076, %v1073
          %v1116 = vpack.c.bf16 %v1077, %v1074
          %v1117 = vpack.c.bf16 %v1081, %v1078
          %v1118 = vpack.c.bf16 %v1082, %v1079
          %v1119 = vpack.c.bf16 %v1083, %v1080
          %v1120 = vpack.c.bf16 %v1087, %v1084
          %v1121 = vpack.c.bf16 %v1088, %v1085
          %v1122 = vpack.c.bf16 %v1089, %v1086
          %v1123 = vpack.c.bf16 %v1093, %v1090
          %v1124 = vpack.c.bf16 %v1094, %v1091
          %v1125 = vpack.c.bf16 %v1095, %v1092
          %v1126 = vpack.c.bf16 %v1099, %v1096
          %v1127 = vpack.c.bf16 %v1100, %v1097
          %v1128 = vpack.c.bf16 %v1101, %v1098
          %v1129 = vpack.c.bf16 %v1105, %v1102
          %v1130 = vpack.c.bf16 %v1106, %v1103
          %v1131 = vpack.c.bf16 %v1107, %v1104
          %v1132 = vadd.s32 %v1012, %v1013
          %v1133 = vadd.s32 %v1132, %v1014
          %v1134 = vand.u32 %v1133, 65535
          %v1135 = vshrl.u32 %v1133, 16
          %v1136 = vcvt.s32.f32 %v1134
          %v1137 = vcvt.s32.f32 %v1135
          %1138 = vadd.xlane.f32.xlu0 %v1136
          %v1139 = vpop.xlane.xlu0 %1138
          %1140 = vadd.xlane.f32.xlu0 %v1137
          %v1141 = vpop.xlane.xlu0 %1140
          %v1142 = vcvt.f32.s32 %v1139
          %v1143 = vcvt.f32.s32 %v1141
          %v1144 = vshll.u32 %v1143, 16
          %v1145 = vadd.s32 %v1144, %v1142
          %v1146 = vadd.s32 %v1015, %v1016
          %v1147 = vadd.s32 %v1146, %v1017
          %v1148 = vand.u32 %v1147, 65535
          %v1149 = vshrl.u32 %v1147, 16
          %v1150 = vcvt.s32.f32 %v1148
          %v1151 = vcvt.s32.f32 %v1149
          %1152 = vadd.xlane.f32.xlu0 %v1150
          %v1153 = vpop.xlane.xlu0 %1152
          %1154 = vadd.xlane.f32.xlu0 %v1151
          %v1155 = vpop.xlane.xlu0 %1154
          %v1156 = vcvt.f32.s32 %v1153
          %v1157 = vcvt.f32.s32 %v1155
          %v1158 = vshll.u32 %v1157, 16
          %v1159 = vadd.s32 %v1158, %v1156
          %v1160 = vadd.s32 %v1018, %v1019
          %v1161 = vadd.s32 %v1160, %v1020
          %v1162 = vand.u32 %v1161, 65535
          %v1163 = vshrl.u32 %v1161, 16
          %v1164 = vcvt.s32.f32 %v1162
          %v1165 = vcvt.s32.f32 %v1163
          %1166 = vadd.xlane.f32.xlu0 %v1164
          %v1167 = vpop.xlane.xlu0 %1166
          %1168 = vadd.xlane.f32.xlu0 %v1165
          %v1169 = vpop.xlane.xlu0 %1168
          %v1170 = vcvt.f32.s32 %v1167
          %v1171 = vcvt.f32.s32 %v1169
          %v1172 = vshll.u32 %v1171, 16
          %v1173 = vadd.s32 %v1172, %v1170
          %v1174 = vadd.s32 %v1021, %v1022
          %v1175 = vadd.s32 %v1174, %v1023
          %v1176 = vand.u32 %v1175, 65535
          %v1177 = vshrl.u32 %v1175, 16
          %v1178 = vcvt.s32.f32 %v1176
          %v1179 = vcvt.s32.f32 %v1177
          %1180 = vadd.xlane.f32.xlu0 %v1178
          %v1181 = vpop.xlane.xlu0 %1180
          %1182 = vadd.xlane.f32.xlu0 %v1179
          %v1183 = vpop.xlane.xlu0 %1182
          %v1184 = vcvt.f32.s32 %v1181
          %v1185 = vcvt.f32.s32 %v1183
          %v1186 = vshll.u32 %v1185, 16
          %v1187 = vadd.s32 %v1186, %v1184
          %v1188 = vadd.s32 %v1024, %v1025
          %v1189 = vadd.s32 %v1188, %v1026
          %v1190 = vand.u32 %v1189, 65535
          %v1191 = vshrl.u32 %v1189, 16
          %v1192 = vcvt.s32.f32 %v1190
          %v1193 = vcvt.s32.f32 %v1191
          %1194 = vadd.xlane.f32.xlu0 %v1192
          %v1195 = vpop.xlane.xlu0 %1194
          %1196 = vadd.xlane.f32.xlu0 %v1193
          %v1197 = vpop.xlane.xlu0 %1196
          %v1198 = vcvt.f32.s32 %v1195
          %v1199 = vcvt.f32.s32 %v1197
          %v1200 = vshll.u32 %v1199, 16
          %v1201 = vadd.s32 %v1200, %v1198
          %v1202 = vadd.s32 %v1027, %v1028
          %v1203 = vadd.s32 %v1202, %v1029
          %v1204 = vand.u32 %v1203, 65535
          %v1205 = vshrl.u32 %v1203, 16
          %v1206 = vcvt.s32.f32 %v1204
          %v1207 = vcvt.s32.f32 %v1205
          %1208 = vadd.xlane.f32.xlu0 %v1206
          %v1209 = vpop.xlane.xlu0 %1208
          %1210 = vadd.xlane.f32.xlu0 %v1207
          %v1211 = vpop.xlane.xlu0 %1210
          %v1212 = vcvt.f32.s32 %v1209
          %v1213 = vcvt.f32.s32 %v1211
          %v1214 = vshll.u32 %v1213, 16
          %v1215 = vadd.s32 %v1214, %v1212
          %v1216 = vadd.s32 %v1030, %v1031
          %v1217 = vadd.s32 %v1216, %v1032
          %v1218 = vand.u32 %v1217, 65535
          %v1219 = vshrl.u32 %v1217, 16
          %v1220 = vcvt.s32.f32 %v1218
          %v1221 = vcvt.s32.f32 %v1219
          %1222 = vadd.xlane.f32.xlu0 %v1220
          %v1223 = vpop.xlane.xlu0 %1222
          %1224 = vadd.xlane.f32.xlu0 %v1221
          %v1225 = vpop.xlane.xlu0 %1224
          %v1226 = vcvt.f32.s32 %v1223
          %v1227 = vcvt.f32.s32 %v1225
          %v1228 = vshll.u32 %v1227, 16
          %v1229 = vadd.s32 %v1228, %v1226
          %v1230 = vadd.s32 %v1033, %v1034
          %v1231 = vadd.s32 %v1230, %v1035
          %v1232 = vand.u32 %v1231, 65535
          %v1233 = vshrl.u32 %v1231, 16
          %v1234 = vcvt.s32.f32 %v1232
          %v1235 = vcvt.s32.f32 %v1233
          %1236 = vadd.xlane.f32.xlu0 %v1234
          %v1237 = vpop.xlane.xlu0 %1236
          %1238 = vadd.xlane.f32.xlu0 %v1235
          %v1239 = vpop.xlane.xlu0 %1238
          %v1240 = vcvt.f32.s32 %v1237
          %v1241 = vcvt.f32.s32 %v1239
          %v1242 = vshll.u32 %v1241, 16
          %v1243 = vadd.s32 %v1242, %v1240
          %v1244 = vadd.s32 %v1036, %v1037
          %v1245 = vadd.s32 %v1244, %v1038
          %v1246 = vand.u32 %v1245, 65535
          %v1247 = vshrl.u32 %v1245, 16
          %v1248 = vcvt.s32.f32 %v1246
          %v1249 = vcvt.s32.f32 %v1247
          %1250 = vadd.xlane.f32.xlu0 %v1248
          %v1251 = vpop.xlane.xlu0 %1250
          %1252 = vadd.xlane.f32.xlu0 %v1249
          %v1253 = vpop.xlane.xlu0 %1252
          %v1254 = vcvt.f32.s32 %v1251
          %v1255 = vcvt.f32.s32 %v1253
          %v1256 = vshll.u32 %v1255, 16
          %v1257 = vadd.s32 %v1256, %v1254
          %v1258 = vadd.s32 %v1039, %v1040
          %v1259 = vadd.s32 %v1258, %v1041
          %v1260 = vand.u32 %v1259, 65535
          %v1261 = vshrl.u32 %v1259, 16
          %v1262 = vcvt.s32.f32 %v1260
          %v1263 = vcvt.s32.f32 %v1261
          %1264 = vadd.xlane.f32.xlu0 %v1262
          %v1265 = vpop.xlane.xlu0 %1264
          %1266 = vadd.xlane.f32.xlu0 %v1263
          %v1267 = vpop.xlane.xlu0 %1266
          %v1268 = vcvt.f32.s32 %v1265
          %v1269 = vcvt.f32.s32 %v1267
          %v1270 = vshll.u32 %v1269, 16
          %v1271 = vadd.s32 %v1270, %v1268
          %v1272 = vadd.s32 %v1042, %v1043
          %v1273 = vadd.s32 %v1272, %v1044
          %v1274 = vand.u32 %v1273, 65535
          %v1275 = vshrl.u32 %v1273, 16
          %v1276 = vcvt.s32.f32 %v1274
          %v1277 = vcvt.s32.f32 %v1275
          %1278 = vadd.xlane.f32.xlu0 %v1276
          %v1279 = vpop.xlane.xlu0 %1278
          %1280 = vadd.xlane.f32.xlu0 %v1277
          %v1281 = vpop.xlane.xlu0 %1280
          %v1282 = vcvt.f32.s32 %v1279
          %v1283 = vcvt.f32.s32 %v1281
          %v1284 = vshll.u32 %v1283, 16
          %v1285 = vadd.s32 %v1284, %v1282
          %v1286 = vadd.s32 %v1045, %v1046
          %v1287 = vadd.s32 %v1286, %v1047
          %v1288 = vand.u32 %v1287, 65535
          %v1289 = vshrl.u32 %v1287, 16
          %v1290 = vcvt.s32.f32 %v1288
          %v1291 = vcvt.s32.f32 %v1289
          %1292 = vadd.xlane.f32.xlu0 %v1290
          %v1293 = vpop.xlane.xlu0 %1292
          %1294 = vadd.xlane.f32.xlu0 %v1291
          %v1295 = vpop.xlane.xlu0 %1294
          %v1296 = vcvt.f32.s32 %v1293
          %v1297 = vcvt.f32.s32 %v1295
          %v1298 = vshll.u32 %v1297, 16
          %v1299 = vadd.s32 %v1298, %v1296
          %v1300 = vadd.s32 %v1048, %v1049
          %v1301 = vadd.s32 %v1300, %v1050
          %v1302 = vand.u32 %v1301, 65535
          %v1303 = vshrl.u32 %v1301, 16
          %v1304 = vcvt.s32.f32 %v1302
          %v1305 = vcvt.s32.f32 %v1303
          %1306 = vadd.xlane.f32.xlu0 %v1304
          %v1307 = vpop.xlane.xlu0 %1306
          %1308 = vadd.xlane.f32.xlu0 %v1305
          %v1309 = vpop.xlane.xlu0 %1308
          %v1310 = vcvt.f32.s32 %v1307
          %v1311 = vcvt.f32.s32 %v1309
          %v1312 = vshll.u32 %v1311, 16
          %v1313 = vadd.s32 %v1312, %v1310
          %v1314 = vadd.s32 %v1051, %v1052
          %v1315 = vadd.s32 %v1314, %v1053
          %v1316 = vand.u32 %v1315, 65535
          %v1317 = vshrl.u32 %v1315, 16
          %v1318 = vcvt.s32.f32 %v1316
          %v1319 = vcvt.s32.f32 %v1317
          %1320 = vadd.xlane.f32.xlu0 %v1318
          %v1321 = vpop.xlane.xlu0 %1320
          %1322 = vadd.xlane.f32.xlu0 %v1319
          %v1323 = vpop.xlane.xlu0 %1322
          %v1324 = vcvt.f32.s32 %v1321
          %v1325 = vcvt.f32.s32 %v1323
          %v1326 = vshll.u32 %v1325, 16
          %v1327 = vadd.s32 %v1326, %v1324
          %v1328 = vadd.s32 %v1054, %v1055
          %v1329 = vadd.s32 %v1328, %v1056
          %v1330 = vand.u32 %v1329, 65535
          %v1331 = vshrl.u32 %v1329, 16
          %v1332 = vcvt.s32.f32 %v1330
          %v1333 = vcvt.s32.f32 %v1331
          %1334 = vadd.xlane.f32.xlu0 %v1332
          %v1335 = vpop.xlane.xlu0 %1334
          %1336 = vadd.xlane.f32.xlu0 %v1333
          %v1337 = vpop.xlane.xlu0 %1336
          %v1338 = vcvt.f32.s32 %v1335
          %v1339 = vcvt.f32.s32 %v1337
          %v1340 = vshll.u32 %v1339, 16
          %v1341 = vadd.s32 %v1340, %v1338
          %v1342 = vadd.s32 %v1057, %v1058
          %v1343 = vadd.s32 %v1342, %v1059
          %v1344 = vand.u32 %v1343, 65535
          %v1345 = vshrl.u32 %v1343, 16
          %v1346 = vcvt.s32.f32 %v1344
          %v1347 = vcvt.s32.f32 %v1345
          %1348 = vadd.xlane.f32.xlu0 %v1346
          %v1349 = vpop.xlane.xlu0 %1348
          %1350 = vadd.xlane.f32.xlu0 %v1347
          %v1351 = vpop.xlane.xlu0 %1350
          %v1352 = vcvt.f32.s32 %v1349
          %v1353 = vcvt.f32.s32 %v1351
          %v1354 = vshll.u32 %v1353, 16
          %v1355 = vadd.s32 %v1354, %v1352
          %v1356 = vcvt.s32.f32 %v1145
          %v1357 = vcvt.s32.f32 %v1159
          %v1358 = vcvt.s32.f32 %v1173
          %v1359 = vcvt.s32.f32 %v1187
          %v1360 = vcvt.s32.f32 %v1201
          %v1361 = vcvt.s32.f32 %v1215
          %v1362 = vcvt.s32.f32 %v1229
          %v1363 = vcvt.s32.f32 %v1243
          %v1364 = vcvt.s32.f32 %v1257
          %v1365 = vcvt.s32.f32 %v1271
          %v1366 = vcvt.s32.f32 %v1285
          %v1367 = vcvt.s32.f32 %v1299
          %v1368 = vcvt.s32.f32 %v1313
          %v1369 = vcvt.s32.f32 %v1327
          %v1370 = vcvt.s32.f32 %v1341
          %v1371 = vcvt.s32.f32 %v1355
          %v1372 = vadd.f32 %v1356, 1e-10
          %v1373 = vadd.f32 %v1357, 1e-10
          %v1374 = vadd.f32 %v1358, 1e-10
          %v1375 = vadd.f32 %v1359, 1e-10
          %v1376 = vadd.f32 %v1360, 1e-10
          %v1377 = vadd.f32 %v1361, 1e-10
          %v1378 = vadd.f32 %v1362, 1e-10
          %v1379 = vadd.f32 %v1363, 1e-10
          %v1380 = vadd.f32 %v1364, 1e-10
          %v1381 = vadd.f32 %v1365, 1e-10
          %v1382 = vadd.f32 %v1366, 1e-10
          %v1383 = vadd.f32 %v1367, 1e-10
          %v1384 = vadd.f32 %v1368, 1e-10
          %v1385 = vadd.f32 %v1369, 1e-10
          %v1386 = vadd.f32 %v1370, 1e-10
          %v1387 = vadd.f32 %v1371, 1e-10
          %v1388 = vrcp.pop %v1372
          %v1389 = vmul.f32 %v1372, %v1388
          %v1390 = vsub.f32 1.0, %v1389
          %v1391 = vmul.f32 %v1388, %v1390
          %v1392 = vadd.f32 %v1388, %v1391
          %vm1393 = vweird.f32 %v1372
          %vm1394 = vweird.f32 %v1388
          %vm1395 = vmor %vm1393, %vm1394
          %v1396 = vsel %vm1395, %v1388, %v1392
          %v1397 = vand.u32 2147483647, %v1372
          %vm1398 = vcmp.eq.f32.partialorder %v1397, 8.507059e+37
          %v1399 = vand.u32 %v1372, 2147483648
          %v1400 = vor.u32 1.1754944e-38, %v1399
          %v1401 = vsel %vm1398, %v1400, %v1396
          %v1402 = vmul.f32 1.0, %v1401
          %v1403 = vrcp.pop %v1373
          %v1404 = vmul.f32 %v1373, %v1403
          %v1405 = vsub.f32 1.0, %v1404
          %v1406 = vmul.f32 %v1403, %v1405
          %v1407 = vadd.f32 %v1403, %v1406
          %vm1408 = vweird.f32 %v1373
          %vm1409 = vweird.f32 %v1403
          %vm1410 = vmor %vm1408, %vm1409
          %v1411 = vsel %vm1410, %v1403, %v1407
          %v1412 = vand.u32 2147483647, %v1373
          %vm1413 = vcmp.eq.f32.partialorder %v1412, 8.507059e+37
          %v1414 = vand.u32 %v1373, 2147483648
          %v1415 = vor.u32 1.1754944e-38, %v1414
          %v1416 = vsel %vm1413, %v1415, %v1411
          %v1417 = vmul.f32 1.0, %v1416
          %v1418 = vrcp.pop %v1374
          %v1419 = vmul.f32 %v1374, %v1418
          %v1420 = vsub.f32 1.0, %v1419
          %v1421 = vmul.f32 %v1418, %v1420
          %v1422 = vadd.f32 %v1418, %v1421
          %vm1423 = vweird.f32 %v1374
          %vm1424 = vweird.f32 %v1418
          %vm1425 = vmor %vm1423, %vm1424
          %v1426 = vsel %vm1425, %v1418, %v1422
          %v1427 = vand.u32 2147483647, %v1374
          %vm1428 = vcmp.eq.f32.partialorder %v1427, 8.507059e+37
          %v1429 = vand.u32 %v1374, 2147483648
          %v1430 = vor.u32 1.1754944e-38, %v1429
          %v1431 = vsel %vm1428, %v1430, %v1426
          %v1432 = vmul.f32 1.0, %v1431
          %v1433 = vrcp.pop %v1375
          %v1434 = vmul.f32 %v1375, %v1433
          %v1435 = vsub.f32 1.0, %v1434
          %v1436 = vmul.f32 %v1433, %v1435
          %v1437 = vadd.f32 %v1433, %v1436
          %vm1438 = vweird.f32 %v1375
          %vm1439 = vweird.f32 %v1433
          %vm1440 = vmor %vm1438, %vm1439
          %v1441 = vsel %vm1440, %v1433, %v1437
          %v1442 = vand.u32 2147483647, %v1375
          %vm1443 = vcmp.eq.f32.partialorder %v1442, 8.507059e+37
          %v1444 = vand.u32 %v1375, 2147483648
          %v1445 = vor.u32 1.1754944e-38, %v1444
          %v1446 = vsel %vm1443, %v1445, %v1441
          %v1447 = vmul.f32 1.0, %v1446
          %v1448 = vrcp.pop %v1376
          %v1449 = vmul.f32 %v1376, %v1448
          %v1450 = vsub.f32 1.0, %v1449
          %v1451 = vmul.f32 %v1448, %v1450
          %v1452 = vadd.f32 %v1448, %v1451
          %vm1453 = vweird.f32 %v1376
          %vm1454 = vweird.f32 %v1448
          %vm1455 = vmor %vm1453, %vm1454
          %v1456 = vsel %vm1455, %v1448, %v1452
          %v1457 = vand.u32 2147483647, %v1376
          %vm1458 = vcmp.eq.f32.partialorder %v1457, 8.507059e+37
          %v1459 = vand.u32 %v1376, 2147483648
          %v1460 = vor.u32 1.1754944e-38, %v1459
          %v1461 = vsel %vm1458, %v1460, %v1456
          %v1462 = vmul.f32 1.0, %v1461
          %v1463 = vrcp.pop %v1377
          %v1464 = vmul.f32 %v1377, %v1463
          %v1465 = vsub.f32 1.0, %v1464
          %v1466 = vmul.f32 %v1463, %v1465
          %v1467 = vadd.f32 %v1463, %v1466
          %vm1468 = vweird.f32 %v1377
          %vm1469 = vweird.f32 %v1463
          %vm1470 = vmor %vm1468, %vm1469
          %v1471 = vsel %vm1470, %v1463, %v1467
          %v1472 = vand.u32 2147483647, %v1377
          %vm1473 = vcmp.eq.f32.partialorder %v1472, 8.507059e+37
          %v1474 = vand.u32 %v1377, 2147483648
          %v1475 = vor.u32 1.1754944e-38, %v1474
          %v1476 = vsel %vm1473, %v1475, %v1471
          %v1477 = vmul.f32 1.0, %v1476
          %v1478 = vrcp.pop %v1378
          %v1479 = vmul.f32 %v1378, %v1478
          %v1480 = vsub.f32 1.0, %v1479
          %v1481 = vmul.f32 %v1478, %v1480
          %v1482 = vadd.f32 %v1478, %v1481
          %vm1483 = vweird.f32 %v1378
          %vm1484 = vweird.f32 %v1478
          %vm1485 = vmor %vm1483, %vm1484
          %v1486 = vsel %vm1485, %v1478, %v1482
          %v1487 = vand.u32 2147483647, %v1378
          %vm1488 = vcmp.eq.f32.partialorder %v1487, 8.507059e+37
          %v1489 = vand.u32 %v1378, 2147483648
          %v1490 = vor.u32 1.1754944e-38, %v1489
          %v1491 = vsel %vm1488, %v1490, %v1486
          %v1492 = vmul.f32 1.0, %v1491
          %v1493 = vrcp.pop %v1379
          %v1494 = vmul.f32 %v1379, %v1493
          %v1495 = vsub.f32 1.0, %v1494
          %v1496 = vmul.f32 %v1493, %v1495
          %v1497 = vadd.f32 %v1493, %v1496
          %vm1498 = vweird.f32 %v1379
          %vm1499 = vweird.f32 %v1493
          %vm1500 = vmor %vm1498, %vm1499
          %v1501 = vsel %vm1500, %v1493, %v1497
          %v1502 = vand.u32 2147483647, %v1379
          %vm1503 = vcmp.eq.f32.partialorder %v1502, 8.507059e+37
          %v1504 = vand.u32 %v1379, 2147483648
          %v1505 = vor.u32 1.1754944e-38, %v1504
          %v1506 = vsel %vm1503, %v1505, %v1501
          %v1507 = vmul.f32 1.0, %v1506
          %v1508 = vrcp.pop %v1380
          %v1509 = vmul.f32 %v1380, %v1508
          %v1510 = vsub.f32 1.0, %v1509
          %v1511 = vmul.f32 %v1508, %v1510
          %v1512 = vadd.f32 %v1508, %v1511
          %vm1513 = vweird.f32 %v1380
          %vm1514 = vweird.f32 %v1508
          %vm1515 = vmor %vm1513, %vm1514
          %v1516 = vsel %vm1515, %v1508, %v1512
          %v1517 = vand.u32 2147483647, %v1380
          %vm1518 = vcmp.eq.f32.partialorder %v1517, 8.507059e+37
          %v1519 = vand.u32 %v1380, 2147483648
          %v1520 = vor.u32 1.1754944e-38, %v1519
          %v1521 = vsel %vm1518, %v1520, %v1516
          %v1522 = vmul.f32 1.0, %v1521
          %v1523 = vrcp.pop %v1381
          %v1524 = vmul.f32 %v1381, %v1523
          %v1525 = vsub.f32 1.0, %v1524
          %v1526 = vmul.f32 %v1523, %v1525
          %v1527 = vadd.f32 %v1523, %v1526
          %vm1528 = vweird.f32 %v1381
          %vm1529 = vweird.f32 %v1523
          %vm1530 = vmor %vm1528, %vm1529
          %v1531 = vsel %vm1530, %v1523, %v1527
          %v1532 = vand.u32 2147483647, %v1381
          %vm1533 = vcmp.eq.f32.partialorder %v1532, 8.507059e+37
          %v1534 = vand.u32 %v1381, 2147483648
          %v1535 = vor.u32 1.1754944e-38, %v1534
          %v1536 = vsel %vm1533, %v1535, %v1531
          %v1537 = vmul.f32 1.0, %v1536
          %v1538 = vrcp.pop %v1382
          %v1539 = vmul.f32 %v1382, %v1538
          %v1540 = vsub.f32 1.0, %v1539
          %v1541 = vmul.f32 %v1538, %v1540
          %v1542 = vadd.f32 %v1538, %v1541
          %vm1543 = vweird.f32 %v1382
          %vm1544 = vweird.f32 %v1538
          %vm1545 = vmor %vm1543, %vm1544
          %v1546 = vsel %vm1545, %v1538, %v1542
          %v1547 = vand.u32 2147483647, %v1382
          %vm1548 = vcmp.eq.f32.partialorder %v1547, 8.507059e+37
          %v1549 = vand.u32 %v1382, 2147483648
          %v1550 = vor.u32 1.1754944e-38, %v1549
          %v1551 = vsel %vm1548, %v1550, %v1546
          %v1552 = vmul.f32 1.0, %v1551
          %v1553 = vrcp.pop %v1383
          %v1554 = vmul.f32 %v1383, %v1553
          %v1555 = vsub.f32 1.0, %v1554
          %v1556 = vmul.f32 %v1553, %v1555
          %v1557 = vadd.f32 %v1553, %v1556
          %vm1558 = vweird.f32 %v1383
          %vm1559 = vweird.f32 %v1553
          %vm1560 = vmor %vm1558, %vm1559
          %v1561 = vsel %vm1560, %v1553, %v1557
          %v1562 = vand.u32 2147483647, %v1383
          %vm1563 = vcmp.eq.f32.partialorder %v1562, 8.507059e+37
          %v1564 = vand.u32 %v1383, 2147483648
          %v1565 = vor.u32 1.1754944e-38, %v1564
          %v1566 = vsel %vm1563, %v1565, %v1561
          %v1567 = vmul.f32 1.0, %v1566
          %v1568 = vrcp.pop %v1384
          %v1569 = vmul.f32 %v1384, %v1568
          %v1570 = vsub.f32 1.0, %v1569
          %v1571 = vmul.f32 %v1568, %v1570
          %v1572 = vadd.f32 %v1568, %v1571
          %vm1573 = vweird.f32 %v1384
          %vm1574 = vweird.f32 %v1568
          %vm1575 = vmor %vm1573, %vm1574
          %v1576 = vsel %vm1575, %v1568, %v1572
          %v1577 = vand.u32 2147483647, %v1384
          %vm1578 = vcmp.eq.f32.partialorder %v1577, 8.507059e+37
          %v1579 = vand.u32 %v1384, 2147483648
          %v1580 = vor.u32 1.1754944e-38, %v1579
          %v1581 = vsel %vm1578, %v1580, %v1576
          %v1582 = vmul.f32 1.0, %v1581
          %v1583 = vrcp.pop %v1385
          %v1584 = vmul.f32 %v1385, %v1583
          %v1585 = vsub.f32 1.0, %v1584
          %v1586 = vmul.f32 %v1583, %v1585
          %v1587 = vadd.f32 %v1583, %v1586
          %vm1588 = vweird.f32 %v1385
          %vm1589 = vweird.f32 %v1583
          %vm1590 = vmor %vm1588, %vm1589
          %v1591 = vsel %vm1590, %v1583, %v1587
          %v1592 = vand.u32 2147483647, %v1385
          %vm1593 = vcmp.eq.f32.partialorder %v1592, 8.507059e+37
          %v1594 = vand.u32 %v1385, 2147483648
          %v1595 = vor.u32 1.1754944e-38, %v1594
          %v1596 = vsel %vm1593, %v1595, %v1591
          %v1597 = vmul.f32 1.0, %v1596
          %v1598 = vrcp.pop %v1386
          %v1599 = vmul.f32 %v1386, %v1598
          %v1600 = vsub.f32 1.0, %v1599
          %v1601 = vmul.f32 %v1598, %v1600
          %v1602 = vadd.f32 %v1598, %v1601
          %vm1603 = vweird.f32 %v1386
          %vm1604 = vweird.f32 %v1598
          %vm1605 = vmor %vm1603, %vm1604
          %v1606 = vsel %vm1605, %v1598, %v1602
          %v1607 = vand.u32 2147483647, %v1386
          %vm1608 = vcmp.eq.f32.partialorder %v1607, 8.507059e+37
          %v1609 = vand.u32 %v1386, 2147483648
          %v1610 = vor.u32 1.1754944e-38, %v1609
          %v1611 = vsel %vm1608, %v1610, %v1606
          %v1612 = vmul.f32 1.0, %v1611
          %v1613 = vrcp.pop %v1387
          %v1614 = vmul.f32 %v1387, %v1613
          %v1615 = vsub.f32 1.0, %v1614
          %v1616 = vmul.f32 %v1613, %v1615
          %v1617 = vadd.f32 %v1613, %v1616
          %vm1618 = vweird.f32 %v1387
          %vm1619 = vweird.f32 %v1613
          %vm1620 = vmor %vm1618, %vm1619
          %v1621 = vsel %vm1620, %v1613, %v1617
          %v1622 = vand.u32 2147483647, %v1387
          %vm1623 = vcmp.eq.f32.partialorder %v1622, 8.507059e+37
          %v1624 = vand.u32 %v1387, 2147483648
          %v1625 = vor.u32 1.1754944e-38, %v1624
          %v1626 = vsel %vm1623, %v1625, %v1621
          %v1627 = vmul.f32 1.0, %v1626
          %v1628 = vld [vmem:[#allocation2] sm:$0xf]
          %v1629 = vld [vmem:[#allocation2 + $0x4] sm:$0xf]
          %v1630 = vld [vmem:[#allocation2 + $0x8] sm:$0xf]
          %v1631 = vld [vmem:[#allocation2 + $0xc] sm:$0xf]
          %v1632 = vld [vmem:[#allocation2 + $0x10] sm:$0xf]
          %v1633 = vld [vmem:[#allocation2 + $0x14] sm:$0xf]
          %v1634 = vld [vmem:[#allocation2 + $0x18] sm:$0xf]
          %v1635 = vld [vmem:[#allocation2 + $0x1c] sm:$0xf]
          %v1636 = vld [vmem:[#allocation2 + $0x20] sm:$0xf]
          %v1637 = vld [vmem:[#allocation2 + $0x24] sm:$0xf]
          %v1638 = vld [vmem:[#allocation2 + $0x28] sm:$0xf]
          %v1639 = vld [vmem:[#allocation2 + $0x2c] sm:$0xf]
          %v1640 = vld [vmem:[#allocation2 + $0x30] sm:$0xf]
          %v1641 = vld [vmem:[#allocation2 + $0x34] sm:$0xf]
          %v1642 = vld [vmem:[#allocation2 + $0x38] sm:$0xf]
          %v1643 = vld [vmem:[#allocation2 + $0x3c] sm:$0xf]
          %v1644 = vld [vmem:[#allocation2 + $0x40] sm:$0xf]
          %v1645 = vld [vmem:[#allocation2 + $0x44] sm:$0xf]
          %v1646 = vld [vmem:[#allocation2 + $0x48] sm:$0xf]
          %v1647 = vld [vmem:[#allocation2 + $0x4c] sm:$0xf]
          %v1648 = vld [vmem:[#allocation2 + $0x50] sm:$0xf]
          %v1649 = vld [vmem:[#allocation2 + $0x54] sm:$0xf]
          %v1650 = vld [vmem:[#allocation2 + $0x58] sm:$0xf]
          %v1651 = vld [vmem:[#allocation2 + $0x5c] sm:$0xf]
          %v1652 = vld [vmem:[#allocation2 + $0x60] sm:$0xf]
          %v1653 = vld [vmem:[#allocation2 + $0x64] sm:$0xf]
          %v1654 = vld [vmem:[#allocation2 + $0x68] sm:$0xf]
          %v1655 = vld [vmem:[#allocation2 + $0x6c] sm:$0xf]
          %v1656 = vld [vmem:[#allocation2 + $0x70] sm:$0xf]
          %v1657 = vld [vmem:[#allocation2 + $0x74] sm:$0xf]
          %v1658 = vld [vmem:[#allocation2 + $0x78] sm:$0xf]
          %v1659 = vld [vmem:[#allocation2 + $0x7c] sm:$0xf]
          %v1660 = vld [vmem:[#allocation2 + $0x80] sm:$0xf]
          %v1661 = vld [vmem:[#allocation2 + $0x84] sm:$0xf]
          %v1662 = vld [vmem:[#allocation2 + $0x88] sm:$0xf]
          %v1663 = vld [vmem:[#allocation2 + $0x8c] sm:$0xf]
          %v1664 = vld [vmem:[#allocation2 + $0x90] sm:$0xf]
          %v1665 = vld [vmem:[#allocation2 + $0x94] sm:$0xf]
          %v1666 = vld [vmem:[#allocation2 + $0x98] sm:$0xf]
          %v1667 = vld [vmem:[#allocation2 + $0x9c] sm:$0xf]
          %v1668 = vld [vmem:[#allocation2 + $0xa0] sm:$0xf]
          %v1669 = vld [vmem:[#allocation2 + $0xa4] sm:$0xf]
          %v1670 = vld [vmem:[#allocation2 + $0xa8] sm:$0xf]
          %v1671 = vld [vmem:[#allocation2 + $0xac] sm:$0xf]
          %v1672 = vld [vmem:[#allocation2 + $0xb0] sm:$0xf]
          %v1673 = vld [vmem:[#allocation2 + $0xb4] sm:$0xf]
          %v1674 = vld [vmem:[#allocation2 + $0xb8] sm:$0xf]
          %v1675 = vld [vmem:[#allocation2 + $0xbc] sm:$0xf]
          %v1724 = vunpack.c.l.b16 %v1628
          %v1725 = vunpack.c.l.b16 %v1629
          %v1726 = vunpack.c.l.b16 %v1630
          %v1727 = vunpack.c.l.b16 %v1631
          %v1728 = vunpack.c.l.b16 %v1632
          %v1729 = vunpack.c.l.b16 %v1633
          %v1730 = vunpack.c.l.b16 %v1634
          %v1731 = vunpack.c.l.b16 %v1635
          %v1732 = vunpack.c.l.b16 %v1636
          %v1733 = vunpack.c.l.b16 %v1637
          %v1734 = vunpack.c.l.b16 %v1638
          %v1735 = vunpack.c.l.b16 %v1639
          %v1736 = vunpack.c.l.b16 %v1640
          %v1737 = vunpack.c.l.b16 %v1641
          %v1738 = vunpack.c.l.b16 %v1642
          %v1739 = vunpack.c.l.b16 %v1643
          %v1740 = vunpack.c.l.b16 %v1644
          %v1741 = vunpack.c.l.b16 %v1645
          %v1742 = vunpack.c.l.b16 %v1646
          %v1743 = vunpack.c.l.b16 %v1647
          %v1744 = vunpack.c.l.b16 %v1648
          %v1745 = vunpack.c.l.b16 %v1649
          %v1746 = vunpack.c.l.b16 %v1650
          %v1747 = vunpack.c.l.b16 %v1651
          %v1748 = vunpack.c.l.b16 %v1652
          %v1749 = vunpack.c.l.b16 %v1653
          %v1750 = vunpack.c.l.b16 %v1654
          %v1751 = vunpack.c.l.b16 %v1655
          %v1752 = vunpack.c.l.b16 %v1656
          %v1753 = vunpack.c.l.b16 %v1657
          %v1754 = vunpack.c.l.b16 %v1658
          %v1755 = vunpack.c.l.b16 %v1659
          %v1756 = vunpack.c.l.b16 %v1660
          %v1757 = vunpack.c.l.b16 %v1661
          %v1758 = vunpack.c.l.b16 %v1662
          %v1759 = vunpack.c.l.b16 %v1663
          %v1760 = vunpack.c.l.b16 %v1664
          %v1761 = vunpack.c.l.b16 %v1665
          %v1762 = vunpack.c.l.b16 %v1666
          %v1763 = vunpack.c.l.b16 %v1667
          %v1764 = vunpack.c.l.b16 %v1668
          %v1765 = vunpack.c.l.b16 %v1669
          %v1766 = vunpack.c.l.b16 %v1670
          %v1767 = vunpack.c.l.b16 %v1671
          %v1768 = vunpack.c.l.b16 %v1672
          %v1769 = vunpack.c.l.b16 %v1673
          %v1770 = vunpack.c.l.b16 %v1674
          %v1771 = vunpack.c.l.b16 %v1675
          %v1772 = vpack.c.b16 %v1725, %v1724
          %v1773 = vpack.c.b16 %v1727, %v1726
          %v1774 = vpack.c.b16 %v1729, %v1728
          %v1775 = vpack.c.b16 %v1731, %v1730
          %v1776 = vpack.c.b16 %v1733, %v1732
          %v1777 = vpack.c.b16 %v1735, %v1734
          %v1778 = vpack.c.b16 %v1737, %v1736
          %v1779 = vpack.c.b16 %v1739, %v1738
          %v1780 = vpack.c.b16 %v1741, %v1740
          %v1781 = vpack.c.b16 %v1743, %v1742
          %v1782 = vpack.c.b16 %v1745, %v1744
          %v1783 = vpack.c.b16 %v1747, %v1746
          %v1784 = vpack.c.b16 %v1749, %v1748
          %v1785 = vpack.c.b16 %v1751, %v1750
          %v1786 = vpack.c.b16 %v1753, %v1752
          %v1787 = vpack.c.b16 %v1755, %v1754
          %v1788 = vpack.c.b16 %v1757, %v1756
          %v1789 = vpack.c.b16 %v1759, %v1758
          %v1790 = vpack.c.b16 %v1761, %v1760
          %v1791 = vpack.c.b16 %v1763, %v1762
          %v1792 = vpack.c.b16 %v1765, %v1764
          %v1793 = vpack.c.b16 %v1767, %v1766
          %v1794 = vpack.c.b16 %v1769, %v1768
          %v1795 = vpack.c.b16 %v1771, %v1770
          %1820 = vmatpush.bf16.msra.mxu0 %v1779
          %1821 = vmatpush.bf16.msra.mxu0 %v1778
          %1822 = vmatpush.bf16.msra.mxu0 %v1777
          %1823 = vmatpush.bf16.msra.mxu0 %v1776
          %1824 = vmatpush.bf16.msra.mxu0 %v1775
          %1825 = vmatpush.bf16.msra.mxu0 %v1774
          %1826 = vmatpush.bf16.msra.mxu0 %v1773
          %1827 = vmatpush.bf16.msra.mxu0 %v1772
          %1828 = vmatmul.bf16.gmra.mxu0 %v1108
          %v1829 = vpop.f32.mrf.mxu0
          %v1830 = vadd.f32 0.0, %v1829
          %v1831 = vpop.f32.mrf.mxu0
          %v1832 = vadd.f32 0.0, %v1831
          %1833 = vmatmul.bf16.gmra.mxu0 %v1111
          %v1834 = vpop.f32.mrf.mxu0
          %v1835 = vadd.f32 0.0, %v1834
          %v1836 = vpop.f32.mrf.mxu0
          %v1837 = vadd.f32 0.0, %v1836
          %1838 = vmatmul.bf16.gmra.mxu0 %v1114
          %v1839 = vpop.f32.mrf.mxu0
          %v1840 = vadd.f32 0.0, %v1839
          %v1841 = vpop.f32.mrf.mxu0
          %v1842 = vadd.f32 0.0, %v1841
          %1843 = vmatmul.bf16.gmra.mxu0 %v1117
          %v1844 = vpop.f32.mrf.mxu0
          %v1845 = vadd.f32 0.0, %v1844
          %v1846 = vpop.f32.mrf.mxu0
          %v1847 = vadd.f32 0.0, %v1846
          %1848 = vmatmul.bf16.gmra.mxu0 %v1120
          %v1849 = vpop.f32.mrf.mxu0
          %v1850 = vadd.f32 0.0, %v1849
          %v1851 = vpop.f32.mrf.mxu0
          %v1852 = vadd.f32 0.0, %v1851
          %1853 = vmatmul.bf16.gmra.mxu0 %v1123
          %v1854 = vpop.f32.mrf.mxu0
          %v1855 = vadd.f32 0.0, %v1854
          %v1856 = vpop.f32.mrf.mxu0
          %v1857 = vadd.f32 0.0, %v1856
          %1858 = vmatmul.bf16.gmra.mxu0 %v1126
          %v1859 = vpop.f32.mrf.mxu0
          %v1860 = vadd.f32 0.0, %v1859
          %v1861 = vpop.f32.mrf.mxu0
          %v1862 = vadd.f32 0.0, %v1861
          %1863 = vmatmul.bf16.gmra.mxu0 %v1129
          %v1864 = vpop.f32.mrf.mxu0
          %v1865 = vadd.f32 0.0, %v1864
          %v1866 = vpop.f32.mrf.mxu0
          %v1867 = vadd.f32 0.0, %v1866
          %1868 = vdwg.mxu0
          %1869 = vmatpush.bf16.msra.mxu0 %v1787
          %1870 = vmatpush.bf16.msra.mxu0 %v1786
          %1871 = vmatpush.bf16.msra.mxu0 %v1785
          %1872 = vmatpush.bf16.msra.mxu0 %v1784
          %1873 = vmatpush.bf16.msra.mxu0 %v1783
          %1874 = vmatpush.bf16.msra.mxu0 %v1782
          %1875 = vmatpush.bf16.msra.mxu0 %v1781
          %1876 = vmatpush.bf16.msra.mxu0 %v1780
          %1877 = vmatmul.bf16.gmra.mxu0 %v1109
          %v1878 = vpop.f32.mrf.mxu0
          %v1879 = vadd.f32 %v1830, %v1878
          %v1880 = vpop.f32.mrf.mxu0
          %v1881 = vadd.f32 %v1832, %v1880
          %1882 = vmatmul.bf16.gmra.mxu0 %v1112
          %v1883 = vpop.f32.mrf.mxu0
          %v1884 = vadd.f32 %v1835, %v1883
          %v1885 = vpop.f32.mrf.mxu0
          %v1886 = vadd.f32 %v1837, %v1885
          %1887 = vmatmul.bf16.gmra.mxu0 %v1115
          %v1888 = vpop.f32.mrf.mxu0
          %v1889 = vadd.f32 %v1840, %v1888
          %v1890 = vpop.f32.mrf.mxu0
          %v1891 = vadd.f32 %v1842, %v1890
          %1892 = vmatmul.bf16.gmra.mxu0 %v1118
          %v1893 = vpop.f32.mrf.mxu0
          %v1894 = vadd.f32 %v1845, %v1893
          %v1895 = vpop.f32.mrf.mxu0
          %v1896 = vadd.f32 %v1847, %v1895
          %1897 = vmatmul.bf16.gmra.mxu0 %v1121
          %v1898 = vpop.f32.mrf.mxu0
          %v1899 = vadd.f32 %v1850, %v1898
          %v1900 = vpop.f32.mrf.mxu0
          %v1901 = vadd.f32 %v1852, %v1900
          %1902 = vmatmul.bf16.gmra.mxu0 %v1124
          %v1903 = vpop.f32.mrf.mxu0
          %v1904 = vadd.f32 %v1855, %v1903
          %v1905 = vpop.f32.mrf.mxu0
          %v1906 = vadd.f32 %v1857, %v1905
          %1907 = vmatmul.bf16.gmra.mxu0 %v1127
          %v1908 = vpop.f32.mrf.mxu0
          %v1909 = vadd.f32 %v1860, %v1908
          %v1910 = vpop.f32.mrf.mxu0
          %v1911 = vadd.f32 %v1862, %v1910
          %1912 = vmatmul.bf16.gmra.mxu0 %v1130
          %v1913 = vpop.f32.mrf.mxu0
          %v1914 = vadd.f32 %v1865, %v1913
          %v1915 = vpop.f32.mrf.mxu0
          %v1916 = vadd.f32 %v1867, %v1915
          %1917 = vdwg.mxu0
          %1918 = vmatpush.bf16.msra.mxu0 %v1795
          %1919 = vmatpush.bf16.msra.mxu0 %v1794
          %1920 = vmatpush.bf16.msra.mxu0 %v1793
          %1921 = vmatpush.bf16.msra.mxu0 %v1792
          %1922 = vmatpush.bf16.msra.mxu0 %v1791
          %1923 = vmatpush.bf16.msra.mxu0 %v1790
          %1924 = vmatpush.bf16.msra.mxu0 %v1789
          %1925 = vmatpush.bf16.msra.mxu0 %v1788
          %1926 = vmatmul.bf16.gmra.mxu0 %v1110
          %v1927 = vpop.f32.mrf.mxu0
          %v1928 = vadd.f32 %v1879, %v1927
          %v1929 = vpop.f32.mrf.mxu0
          %v1930 = vadd.f32 %v1881, %v1929
          %1931 = vmatmul.bf16.gmra.mxu0 %v1113
          %v1932 = vpop.f32.mrf.mxu0
          %v1933 = vadd.f32 %v1884, %v1932
          %v1934 = vpop.f32.mrf.mxu0
          %v1935 = vadd.f32 %v1886, %v1934
          %1936 = vmatmul.bf16.gmra.mxu0 %v1116
          %v1937 = vpop.f32.mrf.mxu0
          %v1938 = vadd.f32 %v1889, %v1937
          %v1939 = vpop.f32.mrf.mxu0
          %v1940 = vadd.f32 %v1891, %v1939
          %1941 = vmatmul.bf16.gmra.mxu0 %v1119
          %v1942 = vpop.f32.mrf.mxu0
          %v1943 = vadd.f32 %v1894, %v1942
          %v1944 = vpop.f32.mrf.mxu0
          %v1945 = vadd.f32 %v1896, %v1944
          %1946 = vmatmul.bf16.gmra.mxu0 %v1122
          %v1947 = vpop.f32.mrf.mxu0
          %v1948 = vadd.f32 %v1899, %v1947
          %v1949 = vpop.f32.mrf.mxu0
          %v1950 = vadd.f32 %v1901, %v1949
          %1951 = vmatmul.bf16.gmra.mxu0 %v1125
          %v1952 = vpop.f32.mrf.mxu0
          %v1953 = vadd.f32 %v1904, %v1952
          %v1954 = vpop.f32.mrf.mxu0
          %v1955 = vadd.f32 %v1906, %v1954
          %1956 = vmatmul.bf16.gmra.mxu0 %v1128
          %v1957 = vpop.f32.mrf.mxu0
          %v1958 = vadd.f32 %v1909, %v1957
          %v1959 = vpop.f32.mrf.mxu0
          %v1960 = vadd.f32 %v1911, %v1959
          %1961 = vmatmul.bf16.gmra.mxu0 %v1131
          %v1962 = vpop.f32.mrf.mxu0
          %v1963 = vadd.f32 %v1914, %v1962
          %v1964 = vpop.f32.mrf.mxu0
          %v1965 = vadd.f32 %v1916, %v1964
          %1966 = vdwg.mxu0
          %v1967 = vmul.f32 %v1928, %v1402
          %v1968 = vmul.f32 %v1930, %v1417
          %v1969 = vmul.f32 %v1933, %v1432
          %v1970 = vmul.f32 %v1935, %v1447
          %v1971 = vmul.f32 %v1938, %v1462
          %v1972 = vmul.f32 %v1940, %v1477
          %v1973 = vmul.f32 %v1943, %v1492
          %v1974 = vmul.f32 %v1945, %v1507
          %v1975 = vmul.f32 %v1948, %v1522
          %v1976 = vmul.f32 %v1950, %v1537
          %v1977 = vmul.f32 %v1953, %v1552
          %v1978 = vmul.f32 %v1955, %v1567
          %v1979 = vmul.f32 %v1958, %v1582
          %v1980 = vmul.f32 %v1960, %v1597
          %v1981 = vmul.f32 %v1963, %v1612
          %v1982 = vmul.f32 %v1965, %v1627
          %v1983 = vsel %vm657, %v1967, %v496
          %v1984 = vsel %vm658, %v1968, %v497
          %v1985 = vsel %vm659, %v1969, %v498
          %v1986 = vsel %vm660, %v1970, %v499
          %v1987 = vsel %vm661, %v1971, %v500
          %v1988 = vsel %vm662, %v1972, %v501
          %v1989 = vsel %vm663, %v1973, %v502
          %v1990 = vsel %vm664, %v1974, %v503
          %v1991 = vsel %vm665, %v1975, %v504
          %v1992 = vsel %vm666, %v1976, %v505
          %v1993 = vsel %vm667, %v1977, %v506
          %v1994 = vsel %vm668, %v1978, %v507
          %v1995 = vsel %vm669, %v1979, %v508
          %v1996 = vsel %vm670, %v1980, %v509
          %v1997 = vsel %vm671, %v1981, %v510
          %v1998 = vsel %vm672, %v1982, %v511
          %1999 = vst [vmem:[%s290] sm:$0xff] %v1983
          %2000 = vst [vmem:[%s290 + $0x8] sm:$0xff] %v1984
          %2001 = vst [vmem:[%s290 + $0x10] sm:$0xff] %v1985
          %2002 = vst [vmem:[%s290 + $0x18] sm:$0xff] %v1986
          %2003 = vst [vmem:[%s290 + $0x20] sm:$0xff] %v1987
          %2004 = vst [vmem:[%s290 + $0x28] sm:$0xff] %v1988
          %2005 = vst [vmem:[%s290 + $0x30] sm:$0xff] %v1989
          %2006 = vst [vmem:[%s290 + $0x38] sm:$0xff] %v1990
          %2007 = vst [vmem:[%s290 + $0x40] sm:$0xff] %v1991
          %2008 = vst [vmem:[%s290 + $0x48] sm:$0xff] %v1992
          %2009 = vst [vmem:[%s290 + $0x50] sm:$0xff] %v1993
          %2010 = vst [vmem:[%s290 + $0x58] sm:$0xff] %v1994
          %2011 = vst [vmem:[%s290 + $0x60] sm:$0xff] %v1995
          %2012 = vst [vmem:[%s290 + $0x68] sm:$0xff] %v1996
          %2013 = vst [vmem:[%s290 + $0x70] sm:$0xff] %v1997
          %2014 = vst [vmem:[%s290 + $0x78] sm:$0xff] %v1998
        $region48: #{tpu_custom_call.1} parent=35 // pred_fallthru
          _
        %p2015 = scmp.eq.s32.totalorder %s578, 0
        // Predicated region
        $region49: #{tpu_custom_call.1} parent=35 // pred_check
          %p2016 = pneg %p2015
        $region50: #{tpu_custom_call.1} parent=35 // pred_check_branch
          %2018 = sbr.rel (%p2016) target = $region52
        $region51: #{tpu_custom_call.1} parent=35 // pred_region
          %2019 = vst [vmem:[%s290] sm:$0xff] %v496
          %2020 = vst [vmem:[%s290 + $0x8] sm:$0xff] %v497
          %2021 = vst [vmem:[%s290 + $0x10] sm:$0xff] %v498
          %2022 = vst [vmem:[%s290 + $0x18] sm:$0xff] %v499
          %2023 = vst [vmem:[%s290 + $0x20] sm:$0xff] %v500
          %2024 = vst [vmem:[%s290 + $0x28] sm:$0xff] %v501
          %2025 = vst [vmem:[%s290 + $0x30] sm:$0xff] %v502
          %2026 = vst [vmem:[%s290 + $0x38] sm:$0xff] %v503
          %2027 = vst [vmem:[%s290 + $0x40] sm:$0xff] %v504
          %2028 = vst [vmem:[%s290 + $0x48] sm:$0xff] %v505
          %2029 = vst [vmem:[%s290 + $0x50] sm:$0xff] %v506
          %2030 = vst [vmem:[%s290 + $0x58] sm:$0xff] %v507
          %2031 = vst [vmem:[%s290 + $0x60] sm:$0xff] %v508
          %2032 = vst [vmem:[%s290 + $0x68] sm:$0xff] %v509
          %2033 = vst [vmem:[%s290 + $0x70] sm:$0xff] %v510
          %2034 = vst [vmem:[%s290 + $0x78] sm:$0xff] %v511
        $region52: #{tpu_custom_call.1} parent=35 // pred_fallthru
          _
        %s2035 = sand.u32 %s151, 1
        %s2036 = scalar_lea.sflag [#allocation5], %s2035
        %s2037 = sand.u32 %s151, 1
        %s2038 = smul.addr %s2037, 128
        %s2039 = scalar_lea.vmem [#allocation6], %s2038
        // Predicated region
        $region53: #{tpu_custom_call.1} parent=35 // pred_check
          %p2040 = pneg %p161
        $region54: #{tpu_custom_call.1} parent=35 // pred_check_branch
          %2042 = sbr.rel (%p2040) target = $region56
        $region55: #{tpu_custom_call.1} parent=35 // pred_region
          %s2043 = smul.u32 16, %s26
          %2045 = vsyncadd %s2036, 0
          %s2046 = smul.addr %s25, 48
          %s2047 = sadd.s32 %s2043, %s2046
          %s2048 = smul.addr %s2047, 8
          %s2049 = scalar_lea.hbm %s4, %s2048
          %s2050 = sshll.u32 %s2039, 4
          %s2051 = int_to_ptr.vmem [resolvable:$true] %s2050
          %s2052 = sshll.u32 %s2049, 4
          %s2053 = int_to_ptr.hbm [resolvable:$true] %s2052
          %2058 = dma.vmem_to_hbm [thread:$0]  %s2051, 2048, %s2053, %s2036, 128, 128, 8
        $region56: #{tpu_custom_call.1} parent=35 // pred_fallthru
          _
      $region36: #{tpu_custom_call.1} parent=5 // pred_fallthru
        _
      %p2059 = scmp.le.s32.totalorder 2, %s16
      // Predicated region
      $region57: #{tpu_custom_call.1} parent=5 // pred_check
        %p2060 = pneg %p2059
      $region58: #{tpu_custom_call.1} parent=5 // pred_check_branch
        %2062 = sbr.rel (%p2060) target = $region60
      $region59: #{tpu_custom_call.1} parent=5 // pred_region
        %s2063 = ssub.s32 %s16, 2
        // Predicated region
        $region61: #{tpu_custom_call.1} parent=59 // pred_check
          %p2064 = pneg %p167
        $region62: #{tpu_custom_call.1} parent=59 // pred_check_branch
          %2066 = sbr.rel (%p2064) target = $region64
        $region63: #{tpu_custom_call.1} parent=59 // pred_region
          %s2067 = sand.u32 %s152, 1
          %s2068 = scalar_lea.sflag [#allocation5], %s2067
          %s2069 = sand.u32 %s152, 1
          %s2070 = smul.addr %s2069, 128
          %s2071 = scalar_lea.vmem [#allocation6], %s2070
          %2073 = dma.done %s2068, 2048
        $region64: #{tpu_custom_call.1} parent=59 // pred_fallthru
          _
      $region60: #{tpu_custom_call.1} parent=5 // pred_fallthru
        _
    $region6: #{tpu_custom_call.1} parent=1 // loop_footer
      %s20 = sadd.s32 1, %s16
    $region7: #{tpu_custom_call.1} parent=1 // loop_footer_branch
      %15 = sbr.rel target = $region3
    $region8: #{tpu_custom_call.1} parent=1 // loop_exit
      _
    %2074 = vsyncpa [#allocation4], 1
    %s2075 = scalar_lea.sflag [#allocation4], 1
    %2076 = vsyncpa %s2075, 1
    %2077 = vsyncpa [#allocation5], 1
    %s2078 = scalar_lea.sflag [#allocation5], 1
    %2079 = vsyncpa %s2078, 1

</llo_original>
